<compile_context>
chip_gen: v5e
topology: v5e:2x2
jax: 0.10.0
libtpu: 0.0.40
codegen_flags: <defaults>
</compile_context>

<pallas_src>
import functools
import math

import jax
import jax.numpy as jnp
from jax.experimental import pallas as pl
from jax.experimental.pallas import tpu as pltpu


# ---------------------------------------------------------------------------
# Fused encoder kernel
# ---------------------------------------------------------------------------
def _encoder_kernel(p0_ref, w1_ref, b1_ref, w2_ref, b2_ref, w3_ref, b3_ref,
                    wfc_ref, o_ref):
    # p0_ref : (16, T, 4*C)   rows ordered (tap2, tap3 | p, n); cols (kh, kw, c)
    # w1_ref : (4*C, F)        b1_ref : (1, F)
    # w2_ref : (4, F, 2F)      b2_ref : (1, 2F)
    # w3_ref : (4, 2F, 4F)     b3_ref : (1, 4F)
    # wfc_ref: (P_tile, 4F, 2*z)
    # o_ref  : (1, N, 2*z)     per-tile partial FC output (bias added outside)
    w1 = w1_ref[...]
    b1 = b1_ref[...]
    b2 = b2_ref[...]
    b3 = b3_ref[...]

    # ---- conv1 + ReLU fused into conv2 accumulation (16 tap groups) -------
    x2 = []
    for t3 in range(4):
        acc2 = None
        for t2 in range(4):
            x1 = jnp.maximum(
                jnp.dot(p0_ref[t2 * 4 + t3], w1,
                        preferred_element_type=jnp.float32) + b1, 0.0)
            y = jnp.dot(x1, w2_ref[t2], preferred_element_type=jnp.float32)
            acc2 = y if acc2 is None else acc2 + y
        x2.append(jnp.maximum(acc2 + b2, 0.0))          # conv2 + ReLU, (T, 2F)

    # ---- conv3 + ReLU ------------------------------------------------------
    acc3 = None
    for t3 in range(4):
        y = jnp.dot(x2[t3], w3_ref[t3], preferred_element_type=jnp.float32)
        acc3 = y if acc3 is None else acc3 + y
    x3 = jnp.maximum(acc3 + b3, 0.0)                    # (T, 4F), rows = (p, n)

    # ---- final Linear: sum over conv3 spatial positions in this tile -------
    n_batch = o_ref.shape[1]
    partial = None
    for j in range(wfc_ref.shape[0]):
        y = jnp.dot(x3[j * n_batch:(j + 1) * n_batch, :], wfc_ref[j],
                    preferred_element_type=jnp.float32)
        partial = y if partial is None else partial + y
    o_ref[0] = partial.astype(o_ref.dtype)


def _pick_spatial_tile(P, N, C4, OC1, OC2, OC3, ZD2,
                       bytes_budget=12 * 1024 * 1024):
    """Largest divisor d of P such that a tile of T=N*d rows fits the VMEM budget
    (f32, pipelined input double-buffered). Keeps tiled dims 8-aligned."""
    for d in range(P, 0, -1):
        if P % d:
            continue
        T = N * d
        if d != P and T % 8:
            continue
        tile_bytes = 4 * (2 * 16 * T * C4        # p0 block (double buffered)
                          + 16 * T * OC1         # conv1 activations
                          + 4 * T * OC2          # conv2 activations
                          + T * OC3              # conv3 activations
                          + 2 * d * OC3 * ZD2    # fc weight block
                          + N * ZD2)             # partial output
        if tile_bytes <= bytes_budget:
            return d
    return P


# ---------------------------------------------------------------------------
# One-time parameter re-layout (hoisted out of the forward pass)
# ---------------------------------------------------------------------------
def preprocess_params(params, channels, n_filters, cout, z_dim):
    C, F = channels, n_filters
    OC3 = 4 * F
    P = cout * cout
    ZD2 = 2 * z_dim
    # Conv weights (OC, IC, kh, kw) -> K ordered (kh, kw, ic); per-tap blocks.
    w1 = params["conv1_w"].transpose(2, 3, 1, 0).reshape(4 * C, F)
    w2 = params["conv2_w"].transpose(2, 3, 1, 0).reshape(4, F, 2 * F)
    w3 = params["conv3_w"].transpose(2, 3, 1, 0).reshape(4, 2 * F, OC3)
    # FC weight (2z, 4F*cout*cout), K ordered (c, y3, x3) -> (P, 4F, 2z), p = y3*cout+x3
    wfc = params["fc_w"].reshape(ZD2, OC3, P).transpose(2, 1, 0)
    return {
        "w1": w1, "b1": params["conv1_b"].reshape(1, F),
        "w2": w2, "b2": params["conv2_b"].reshape(1, 2 * F),
        "w3": w3, "b3": params["conv3_b"].reshape(1, OC3),
        "wfc": wfc, "bfc": params["fc_b"].reshape(1, ZD2),
    }


# ---------------------------------------------------------------------------
# Forward
# ---------------------------------------------------------------------------
def image_encoder_forward(prep, img, *, n_filters, z_dim):
    N, C, S, S2 = img.shape
    assert S == S2 and S % 8 == 0, "img_size must be divisible by 8"
    cout = S // 8
    P = cout * cout
    F = n_filters
    OC3 = 4 * F
    ZD2 = 2 * z_dim
    C4 = 4 * C

    # Single space-to-depth of the input: rows ordered (tap2, tap3, p, n),
    # columns (kh, kw, c). Makes every later patch gather a contiguous row block.
    x = img.reshape(N, C, cout, 2, 2, 2, cout, 2, 2, 2)
    #     axes:      n  c  y3 t3h t2h kh x3 t3w t2w kw
    x = x.transpose(4, 8, 3, 7, 2, 6, 0, 5, 9, 1)
    p0 = x.reshape(16, P * N, C4)

    p_tile = _pick_spatial_tile(P, N, C4, F, 2 * F, OC3, ZD2)
    T = N * p_tile
    G = P // p_tile

    partials = pl.pallas_call(
        _encoder_kernel,
        out_shape=jax.ShapeDtypeStruct((G, N, ZD2), jnp.float32),
        grid=(G,),
        in_specs=[
            pl.BlockSpec((16, T, C4), lambda i: (0, i, 0)),
            pl.BlockSpec((C4, F), lambda i: (0, 0)),
            pl.BlockSpec((1, F), lambda i: (0, 0)),
            pl.BlockSpec((4, F, 2 * F), lambda i: (0, 0, 0)),
            pl.BlockSpec((1, 2 * F), lambda i: (0, 0)),
            pl.BlockSpec((4, 2 * F, OC3), lambda i: (0, 0, 0)),
            pl.BlockSpec((1, OC3), lambda i: (0, 0)),
            pl.BlockSpec((p_tile, OC3, ZD2), lambda i: (i, 0, 0)),
        ],
        out_specs=pl.BlockSpec((1, N, ZD2), lambda i: (i, 0, 0)),
        compiler_params=pltpu.CompilerParams(
            dimension_semantics=("parallel",)),
    )(p0, prep["w1"], prep["b1"], prep["w2"], prep["b2"],
      prep["w3"], prep["b3"], prep["wfc"])

    z_params = partials.sum(axis=0) + prep["bfc"]        # (N, 2*z)
    z_mu, z_logvar = jnp.split(z_params, 2, axis=1)
    return z_mu, z_logvar


# ---------------------------------------------------------------------------
# Module plumbing (matches the PyTorch spec)
# ---------------------------------------------------------------------------
def get_conv_output_dim(I, K, P, S):
    return int((I - K + 2 * P) / float(S) + 1)


def gen_32_conv_output_dim(s):
    for _ in range(3):
        s = get_conv_output_dim(s, 2, 0, 2)
    return s


def init_params(key, channels, img_size, z_dim, n_filters):
    cout = gen_32_conv_output_dim(img_size)
    specs = [
        ("conv1", (n_filters, channels, 2, 2)),
        ("conv2", (n_filters * 2, n_filters, 2, 2)),
        ("conv3", (n_filters * 4, n_filters * 2, 2, 2)),
        ("fc", (z_dim * 2, n_filters * 4 * cout * cout)),
    ]
    params = {}
    for name, shape in specs:
        key, kw, kb = jax.random.split(key, 3)
        bound = 1.0 / math.sqrt(math.prod(shape[1:]))
        params[name + "_w"] = jax.random.uniform(kw, shape, jnp.float32, -bound, bound)
        params[name + "_b"] = jax.random.uniform(kb, (shape[0],), jnp.float32, -bound, bound)
    return params, cout


def _reference_forward(params, img):
    """Plain-JAX reference of the PyTorch module (for in-script validation)."""
    def conv(x, w, b):
        y = jax.lax.conv_general_dilated(
            x, w, window_strides=(2, 2), padding="VALID",
            dimension_numbers=("NCHW", "OIHW", "NCHW"),
            precision=jax.lax.Precision.HIGHEST)
        return jnp.maximum(y + b[None, :, None, None], 0.0)

    out = conv(img, params["conv1_w"], params["conv1_b"])
    out = conv(out, params["conv2_w"], params["conv2_b"])
    out = conv(out, params["conv3_w"], params["conv3_b"])
    flat = out.reshape(out.shape[0], -1)                       # NCHW flatten
    z = jnp.dot(flat, params["fc_w"].T,
                precision=jax.lax.Precision.HIGHEST) + params["fc_b"]
    return jnp.split(z, 2, axis=1)


if __name__ == "__main__":
    channels, img_size, z_dim, n_filters = 4, 16, 8, 8
    batch = 2

    key = jax.random.PRNGKey(0)
    key, kx = jax.random.split(key)
    params, cout = init_params(key, channels, img_size, z_dim, n_filters)
    img = jax.random.normal(kx, (batch, channels, img_size, img_size), jnp.float32)

    prep = preprocess_params(params, channels, n_filters, cout, z_dim)
    fwd = jax.jit(functools.partial(image_encoder_forward,
                                    n_filters=n_filters, z_dim=z_dim))

    z_mu, z_logvar = fwd(prep, img)
    jax.block_until_ready((z_mu, z_logvar))

    assert z_mu.shape == (batch, z_dim) and z_logvar.shape == (batch, z_dim)

    ref_mu, ref_logvar = _reference_forward(params, img)
    assert jnp.allclose(z_mu, ref_mu, atol=1e-2, rtol=1e-2)
    assert jnp.allclose(z_logvar, ref_logvar, atol=1e-2, rtol=1e-2)

    print("KERNEL_OK")
</pallas_src>

<mosaic_0001>
module attributes {stable_mosaic.version = 11 : i64} {
  func.func @_encoder_kernel(%arg0: i32, %arg1: memref<16x8x16xf32, #tpu.memory_space<vmem>>, %arg2: memref<16x8xf32, #tpu.memory_space<vmem>>, %arg3: memref<1x8xf32, #tpu.memory_space<vmem>>, %arg4: memref<4x8x16xf32, #tpu.memory_space<vmem>>, %arg5: memref<1x16xf32, #tpu.memory_space<vmem>>, %arg6: memref<4x16x32xf32, #tpu.memory_space<vmem>>, %arg7: memref<1x32xf32, #tpu.memory_space<vmem>>, %arg8: memref<4x32x16xf32, #tpu.memory_space<vmem>>, %arg9: memref<1x2x16xf32, #tpu.memory_space<vmem>>) attributes {dimension_semantics = [#tpu.dimension_semantics<parallel>], iteration_bounds = array<i64: 1>, scalar_prefetch = 0 : i64, scratch_operands = 0 : i64, tpu.core_type = #tpu.core_type<tc>, window_params = [{transform_indices = @transform_0, window_bounds = array<i64: 16, 8, 16>}, {pipeline_mode = #tpu.pipeline_mode<synchronous>, transform_indices = @transform_1, window_bounds = array<i64: 16, 8>}, {pipeline_mode = #tpu.pipeline_mode<synchronous>, transform_indices = @transform_2, window_bounds = array<i64: 1, 8>}, {pipeline_mode = #tpu.pipeline_mode<synchronous>, transform_indices = @transform_3, window_bounds = array<i64: 4, 8, 16>}, {pipeline_mode = #tpu.pipeline_mode<synchronous>, transform_indices = @transform_4, window_bounds = array<i64: 1, 16>}, {pipeline_mode = #tpu.pipeline_mode<synchronous>, transform_indices = @transform_5, window_bounds = array<i64: 4, 16, 32>}, {pipeline_mode = #tpu.pipeline_mode<synchronous>, transform_indices = @transform_6, window_bounds = array<i64: 1, 32>}, {transform_indices = @transform_7, window_bounds = array<i64: 4, 32, 16>}, {transform_indices = @transform_8, window_bounds = array<i64: 1, 2, 16>}]} {
    %c0 = arith.constant 0 : index
    %c0_0 = arith.constant 0 : index
    %0 = vector.load %arg2[%c0, %c0_0] : memref<16x8xf32, #tpu.memory_space<vmem>>, vector<16x8xf32>
    %c0_1 = arith.constant 0 : index
    %c0_2 = arith.constant 0 : index
    %1 = vector.load %arg3[%c0_1, %c0_2] : memref<1x8xf32, #tpu.memory_space<vmem>>, vector<1x8xf32>
    %c0_3 = arith.constant 0 : index
    %c0_4 = arith.constant 0 : index
    %2 = vector.load %arg5[%c0_3, %c0_4] : memref<1x16xf32, #tpu.memory_space<vmem>>, vector<1x16xf32>
    %c0_5 = arith.constant 0 : index
    %c0_6 = arith.constant 0 : index
    %3 = vector.load %arg7[%c0_5, %c0_6] : memref<1x32xf32, #tpu.memory_space<vmem>>, vector<1x32xf32>
    %c0_7 = arith.constant 0 : index
    %c0_8 = arith.constant 0 : index
    %c0_9 = arith.constant 0 : index
    %4 = vector.load %arg1[%c0_7, %c0_8, %c0_9] : memref<16x8x16xf32, #tpu.memory_space<vmem>>, vector<1x8x16xf32>
    %5 = vector.shape_cast %4 : vector<1x8x16xf32> to vector<8x16xf32>
    %cst = arith.constant dense<0.000000e+00> : vector<8x8xf32>
    %6 = tpu.matmul %5, %0, %cst {dimension_numbers = #tpu.dot_dimension_numbers<[1], [0], [0], [1], [0, 0, 1, 1], [], []>} : vector<8x16xf32>, vector<16x8xf32>, vector<8x8xf32> -> vector<8x8xf32>
    %7 = vector.broadcast %1 : vector<1x8xf32> to vector<8x8xf32>
    %8 = arith.addf %6, %7 : vector<8x8xf32>
    %cst_10 = arith.constant 0.000000e+00 : f32
    %9 = vector.broadcast %cst_10 : f32 to vector<8x8xf32>
    %10 = arith.maximumf %8, %9 : vector<8x8xf32>
    %c0_11 = arith.constant 0 : index
    %c0_12 = arith.constant 0 : index
    %c0_13 = arith.constant 0 : index
    %11 = vector.load %arg4[%c0_11, %c0_12, %c0_13] : memref<4x8x16xf32, #tpu.memory_space<vmem>>, vector<1x8x16xf32>
    %12 = vector.shape_cast %11 : vector<1x8x16xf32> to vector<8x16xf32>
    %cst_14 = arith.constant dense<0.000000e+00> : vector<8x16xf32>
    %13 = tpu.matmul %10, %12, %cst_14 {dimension_numbers = #tpu.dot_dimension_numbers<[1], [0], [0], [1], [0, 0, 1, 1], [], []>} : vector<8x8xf32>, vector<8x16xf32>, vector<8x16xf32> -> vector<8x16xf32>
    %c4 = arith.constant 4 : index
    %c0_15 = arith.constant 0 : index
    %c0_16 = arith.constant 0 : index
    %14 = vector.load %arg1[%c4, %c0_15, %c0_16] : memref<16x8x16xf32, #tpu.memory_space<vmem>>, vector<1x8x16xf32>
    %15 = vector.shape_cast %14 : vector<1x8x16xf32> to vector<8x16xf32>
    %cst_17 = arith.constant dense<0.000000e+00> : vector<8x8xf32>
    %16 = tpu.matmul %15, %0, %cst_17 {dimension_numbers = #tpu.dot_dimension_numbers<[1], [0], [0], [1], [0, 0, 1, 1], [], []>} : vector<8x16xf32>, vector<16x8xf32>, vector<8x8xf32> -> vector<8x8xf32>
    %17 = vector.broadcast %1 : vector<1x8xf32> to vector<8x8xf32>
    %18 = arith.addf %16, %17 : vector<8x8xf32>
    %cst_18 = arith.constant 0.000000e+00 : f32
    %19 = vector.broadcast %cst_18 : f32 to vector<8x8xf32>
    %20 = arith.maximumf %18, %19 : vector<8x8xf32>
    %c1 = arith.constant 1 : index
    %c0_19 = arith.constant 0 : index
    %c0_20 = arith.constant 0 : index
    %21 = vector.load %arg4[%c1, %c0_19, %c0_20] : memref<4x8x16xf32, #tpu.memory_space<vmem>>, vector<1x8x16xf32>
    %22 = vector.shape_cast %21 : vector<1x8x16xf32> to vector<8x16xf32>
    %cst_21 = arith.constant dense<0.000000e+00> : vector<8x16xf32>
    %23 = tpu.matmul %20, %22, %cst_21 {dimension_numbers = #tpu.dot_dimension_numbers<[1], [0], [0], [1], [0, 0, 1, 1], [], []>} : vector<8x8xf32>, vector<8x16xf32>, vector<8x16xf32> -> vector<8x16xf32>
    %24 = arith.addf %13, %23 : vector<8x16xf32>
    %c8 = arith.constant 8 : index
    %c0_22 = arith.constant 0 : index
    %c0_23 = arith.constant 0 : index
    %25 = vector.load %arg1[%c8, %c0_22, %c0_23] : memref<16x8x16xf32, #tpu.memory_space<vmem>>, vector<1x8x16xf32>
    %26 = vector.shape_cast %25 : vector<1x8x16xf32> to vector<8x16xf32>
    %cst_24 = arith.constant dense<0.000000e+00> : vector<8x8xf32>
    %27 = tpu.matmul %26, %0, %cst_24 {dimension_numbers = #tpu.dot_dimension_numbers<[1], [0], [0], [1], [0, 0, 1, 1], [], []>} : vector<8x16xf32>, vector<16x8xf32>, vector<8x8xf32> -> vector<8x8xf32>
    %28 = vector.broadcast %1 : vector<1x8xf32> to vector<8x8xf32>
    %29 = arith.addf %27, %28 : vector<8x8xf32>
    %cst_25 = arith.constant 0.000000e+00 : f32
    %30 = vector.broadcast %cst_25 : f32 to vector<8x8xf32>
    %31 = arith.maximumf %29, %30 : vector<8x8xf32>
    %c2 = arith.constant 2 : index
    %c0_26 = arith.constant 0 : index
    %c0_27 = arith.constant 0 : index
    %32 = vector.load %arg4[%c2, %c0_26, %c0_27] : memref<4x8x16xf32, #tpu.memory_space<vmem>>, vector<1x8x16xf32>
    %33 = vector.shape_cast %32 : vector<1x8x16xf32> to vector<8x16xf32>
    %cst_28 = arith.constant dense<0.000000e+00> : vector<8x16xf32>
    %34 = tpu.matmul %31, %33, %cst_28 {dimension_numbers = #tpu.dot_dimension_numbers<[1], [0], [0], [1], [0, 0, 1, 1], [], []>} : vector<8x8xf32>, vector<8x16xf32>, vector<8x16xf32> -> vector<8x16xf32>
    %35 = arith.addf %24, %34 : vector<8x16xf32>
    %c12 = arith.constant 12 : index
    %c0_29 = arith.constant 0 : index
    %c0_30 = arith.constant 0 : index
    %36 = vector.load %arg1[%c12, %c0_29, %c0_30] : memref<16x8x16xf32, #tpu.memory_space<vmem>>, vector<1x8x16xf32>
    %37 = vector.shape_cast %36 : vector<1x8x16xf32> to vector<8x16xf32>
    %cst_31 = arith.constant dense<0.000000e+00> : vector<8x8xf32>
    %38 = tpu.matmul %37, %0, %cst_31 {dimension_numbers = #tpu.dot_dimension_numbers<[1], [0], [0], [1], [0, 0, 1, 1], [], []>} : vector<8x16xf32>, vector<16x8xf32>, vector<8x8xf32> -> vector<8x8xf32>
    %39 = vector.broadcast %1 : vector<1x8xf32> to vector<8x8xf32>
    %40 = arith.addf %38, %39 : vector<8x8xf32>
    %cst_32 = arith.constant 0.000000e+00 : f32
    %41 = vector.broadcast %cst_32 : f32 to vector<8x8xf32>
    %42 = arith.maximumf %40, %41 : vector<8x8xf32>
    %c3 = arith.constant 3 : index
    %c0_33 = arith.constant 0 : index
    %c0_34 = arith.constant 0 : index
    %43 = vector.load %arg4[%c3, %c0_33, %c0_34] : memref<4x8x16xf32, #tpu.memory_space<vmem>>, vector<1x8x16xf32>
    %44 = vector.shape_cast %43 : vector<1x8x16xf32> to vector<8x16xf32>
    %cst_35 = arith.constant dense<0.000000e+00> : vector<8x16xf32>
    %45 = tpu.matmul %42, %44, %cst_35 {dimension_numbers = #tpu.dot_dimension_numbers<[1], [0], [0], [1], [0, 0, 1, 1], [], []>} : vector<8x8xf32>, vector<8x16xf32>, vector<8x16xf32> -> vector<8x16xf32>
    %46 = arith.addf %35, %45 : vector<8x16xf32>
    %47 = vector.broadcast %2 : vector<1x16xf32> to vector<8x16xf32>
    %48 = arith.addf %46, %47 : vector<8x16xf32>
    %cst_36 = arith.constant 0.000000e+00 : f32
    %49 = vector.broadcast %cst_36 : f32 to vector<8x16xf32>
    %50 = arith.maximumf %48, %49 : vector<8x16xf32>
    %c1_37 = arith.constant 1 : index
    %c0_38 = arith.constant 0 : index
    %c0_39 = arith.constant 0 : index
    %51 = vector.load %arg1[%c1_37, %c0_38, %c0_39] : memref<16x8x16xf32, #tpu.memory_space<vmem>>, vector<1x8x16xf32>
    %52 = vector.shape_cast %51 : vector<1x8x16xf32> to vector<8x16xf32>
    %cst_40 = arith.constant dense<0.000000e+00> : vector<8x8xf32>
    %53 = tpu.matmul %52, %0, %cst_40 {dimension_numbers = #tpu.dot_dimension_numbers<[1], [0], [0], [1], [0, 0, 1, 1], [], []>} : vector<8x16xf32>, vector<16x8xf32>, vector<8x8xf32> -> vector<8x8xf32>
    %54 = vector.broadcast %1 : vector<1x8xf32> to vector<8x8xf32>
    %55 = arith.addf %53, %54 : vector<8x8xf32>
    %cst_41 = arith.constant 0.000000e+00 : f32
    %56 = vector.broadcast %cst_41 : f32 to vector<8x8xf32>
    %57 = arith.maximumf %55, %56 : vector<8x8xf32>
    %c0_42 = arith.constant 0 : index
    %c0_43 = arith.constant 0 : index
    %c0_44 = arith.constant 0 : index
    %58 = vector.load %arg4[%c0_42, %c0_43, %c0_44] : memref<4x8x16xf32, #tpu.memory_space<vmem>>, vector<1x8x16xf32>
    %59 = vector.shape_cast %58 : vector<1x8x16xf32> to vector<8x16xf32>
    %cst_45 = arith.constant dense<0.000000e+00> : vector<8x16xf32>
    %60 = tpu.matmul %57, %59, %cst_45 {dimension_numbers = #tpu.dot_dimension_numbers<[1], [0], [0], [1], [0, 0, 1, 1], [], []>} : vector<8x8xf32>, vector<8x16xf32>, vector<8x16xf32> -> vector<8x16xf32>
    %c5 = arith.constant 5 : index
    %c0_46 = arith.constant 0 : index
    %c0_47 = arith.constant 0 : index
    %61 = vector.load %arg1[%c5, %c0_46, %c0_47] : memref<16x8x16xf32, #tpu.memory_space<vmem>>, vector<1x8x16xf32>
    %62 = vector.shape_cast %61 : vector<1x8x16xf32> to vector<8x16xf32>
    %cst_48 = arith.constant dense<0.000000e+00> : vector<8x8xf32>
    %63 = tpu.matmul %62, %0, %cst_48 {dimension_numbers = #tpu.dot_dimension_numbers<[1], [0], [0], [1], [0, 0, 1, 1], [], []>} : vector<8x16xf32>, vector<16x8xf32>, vector<8x8xf32> -> vector<8x8xf32>
    %64 = vector.broadcast %1 : vector<1x8xf32> to vector<8x8xf32>
    %65 = arith.addf %63, %64 : vector<8x8xf32>
    %cst_49 = arith.constant 0.000000e+00 : f32
    %66 = vector.broadcast %cst_49 : f32 to vector<8x8xf32>
    %67 = arith.maximumf %65, %66 : vector<8x8xf32>
    %c1_50 = arith.constant 1 : index
    %c0_51 = arith.constant 0 : index
    %c0_52 = arith.constant 0 : index
    %68 = vector.load %arg4[%c1_50, %c0_51, %c0_52] : memref<4x8x16xf32, #tpu.memory_space<vmem>>, vector<1x8x16xf32>
    %69 = vector.shape_cast %68 : vector<1x8x16xf32> to vector<8x16xf32>
    %cst_53 = arith.constant dense<0.000000e+00> : vector<8x16xf32>
    %70 = tpu.matmul %67, %69, %cst_53 {dimension_numbers = #tpu.dot_dimension_numbers<[1], [0], [0], [1], [0, 0, 1, 1], [], []>} : vector<8x8xf32>, vector<8x16xf32>, vector<8x16xf32> -> vector<8x16xf32>
    %71 = arith.addf %60, %70 : vector<8x16xf32>
    %c9 = arith.constant 9 : index
    %c0_54 = arith.constant 0 : index
    %c0_55 = arith.constant 0 : index
    %72 = vector.load %arg1[%c9, %c0_54, %c0_55] : memref<16x8x16xf32, #tpu.memory_space<vmem>>, vector<1x8x16xf32>
    %73 = vector.shape_cast %72 : vector<1x8x16xf32> to vector<8x16xf32>
    %cst_56 = arith.constant dense<0.000000e+00> : vector<8x8xf32>
    %74 = tpu.matmul %73, %0, %cst_56 {dimension_numbers = #tpu.dot_dimension_numbers<[1], [0], [0], [1], [0, 0, 1, 1], [], []>} : vector<8x16xf32>, vector<16x8xf32>, vector<8x8xf32> -> vector<8x8xf32>
    %75 = vector.broadcast %1 : vector<1x8xf32> to vector<8x8xf32>
    %76 = arith.addf %74, %75 : vector<8x8xf32>
    %cst_57 = arith.constant 0.000000e+00 : f32
    %77 = vector.broadcast %cst_57 : f32 to vector<8x8xf32>
    %78 = arith.maximumf %76, %77 : vector<8x8xf32>
    %c2_58 = arith.constant 2 : index
    %c0_59 = arith.constant 0 : index
    %c0_60 = arith.constant 0 : index
    %79 = vector.load %arg4[%c2_58, %c0_59, %c0_60] : memref<4x8x16xf32, #tpu.memory_space<vmem>>, vector<1x8x16xf32>
    %80 = vector.shape_cast %79 : vector<1x8x16xf32> to vector<8x16xf32>
    %cst_61 = arith.constant dense<0.000000e+00> : vector<8x16xf32>
    %81 = tpu.matmul %78, %80, %cst_61 {dimension_numbers = #tpu.dot_dimension_numbers<[1], [0], [0], [1], [0, 0, 1, 1], [], []>} : vector<8x8xf32>, vector<8x16xf32>, vector<8x16xf32> -> vector<8x16xf32>
    %82 = arith.addf %71, %81 : vector<8x16xf32>
    %c13 = arith.constant 13 : index
    %c0_62 = arith.constant 0 : index
    %c0_63 = arith.constant 0 : index
    %83 = vector.load %arg1[%c13, %c0_62, %c0_63] : memref<16x8x16xf32, #tpu.memory_space<vmem>>, vector<1x8x16xf32>
    %84 = vector.shape_cast %83 : vector<1x8x16xf32> to vector<8x16xf32>
    %cst_64 = arith.constant dense<0.000000e+00> : vector<8x8xf32>
    %85 = tpu.matmul %84, %0, %cst_64 {dimension_numbers = #tpu.dot_dimension_numbers<[1], [0], [0], [1], [0, 0, 1, 1], [], []>} : vector<8x16xf32>, vector<16x8xf32>, vector<8x8xf32> -> vector<8x8xf32>
    %86 = vector.broadcast %1 : vector<1x8xf32> to vector<8x8xf32>
    %87 = arith.addf %85, %86 : vector<8x8xf32>
    %cst_65 = arith.constant 0.000000e+00 : f32
    %88 = vector.broadcast %cst_65 : f32 to vector<8x8xf32>
    %89 = arith.maximumf %87, %88 : vector<8x8xf32>
    %c3_66 = arith.constant 3 : index
    %c0_67 = arith.constant 0 : index
    %c0_68 = arith.constant 0 : index
    %90 = vector.load %arg4[%c3_66, %c0_67, %c0_68] : memref<4x8x16xf32, #tpu.memory_space<vmem>>, vector<1x8x16xf32>
    %91 = vector.shape_cast %90 : vector<1x8x16xf32> to vector<8x16xf32>
    %cst_69 = arith.constant dense<0.000000e+00> : vector<8x16xf32>
    %92 = tpu.matmul %89, %91, %cst_69 {dimension_numbers = #tpu.dot_dimension_numbers<[1], [0], [0], [1], [0, 0, 1, 1], [], []>} : vector<8x8xf32>, vector<8x16xf32>, vector<8x16xf32> -> vector<8x16xf32>
    %93 = arith.addf %82, %92 : vector<8x16xf32>
    %94 = vector.broadcast %2 : vector<1x16xf32> to vector<8x16xf32>
    %95 = arith.addf %93, %94 : vector<8x16xf32>
    %cst_70 = arith.constant 0.000000e+00 : f32
    %96 = vector.broadcast %cst_70 : f32 to vector<8x16xf32>
    %97 = arith.maximumf %95, %96 : vector<8x16xf32>
    %c2_71 = arith.constant 2 : index
    %c0_72 = arith.constant 0 : index
    %c0_73 = arith.constant 0 : index
    %98 = vector.load %arg1[%c2_71, %c0_72, %c0_73] : memref<16x8x16xf32, #tpu.memory_space<vmem>>, vector<1x8x16xf32>
    %99 = vector.shape_cast %98 : vector<1x8x16xf32> to vector<8x16xf32>
    %cst_74 = arith.constant dense<0.000000e+00> : vector<8x8xf32>
    %100 = tpu.matmul %99, %0, %cst_74 {dimension_numbers = #tpu.dot_dimension_numbers<[1], [0], [0], [1], [0, 0, 1, 1], [], []>} : vector<8x16xf32>, vector<16x8xf32>, vector<8x8xf32> -> vector<8x8xf32>
    %101 = vector.broadcast %1 : vector<1x8xf32> to vector<8x8xf32>
    %102 = arith.addf %100, %101 : vector<8x8xf32>
    %cst_75 = arith.constant 0.000000e+00 : f32
    %103 = vector.broadcast %cst_75 : f32 to vector<8x8xf32>
    %104 = arith.maximumf %102, %103 : vector<8x8xf32>
    %c0_76 = arith.constant 0 : index
    %c0_77 = arith.constant 0 : index
    %c0_78 = arith.constant 0 : index
    %105 = vector.load %arg4[%c0_76, %c0_77, %c0_78] : memref<4x8x16xf32, #tpu.memory_space<vmem>>, vector<1x8x16xf32>
    %106 = vector.shape_cast %105 : vector<1x8x16xf32> to vector<8x16xf32>
    %cst_79 = arith.constant dense<0.000000e+00> : vector<8x16xf32>
    %107 = tpu.matmul %104, %106, %cst_79 {dimension_numbers = #tpu.dot_dimension_numbers<[1], [0], [0], [1], [0, 0, 1, 1], [], []>} : vector<8x8xf32>, vector<8x16xf32>, vector<8x16xf32> -> vector<8x16xf32>
    %c6 = arith.constant 6 : index
    %c0_80 = arith.constant 0 : index
    %c0_81 = arith.constant 0 : index
    %108 = vector.load %arg1[%c6, %c0_80, %c0_81] : memref<16x8x16xf32, #tpu.memory_space<vmem>>, vector<1x8x16xf32>
    %109 = vector.shape_cast %108 : vector<1x8x16xf32> to vector<8x16xf32>
    %cst_82 = arith.constant dense<0.000000e+00> : vector<8x8xf32>
    %110 = tpu.matmul %109, %0, %cst_82 {dimension_numbers = #tpu.dot_dimension_numbers<[1], [0], [0], [1], [0, 0, 1, 1], [], []>} : vector<8x16xf32>, vector<16x8xf32>, vector<8x8xf32> -> vector<8x8xf32>
    %111 = vector.broadcast %1 : vector<1x8xf32> to vector<8x8xf32>
    %112 = arith.addf %110, %111 : vector<8x8xf32>
    %cst_83 = arith.constant 0.000000e+00 : f32
    %113 = vector.broadcast %cst_83 : f32 to vector<8x8xf32>
    %114 = arith.maximumf %112, %113 : vector<8x8xf32>
    %c1_84 = arith.constant 1 : index
    %c0_85 = arith.constant 0 : index
    %c0_86 = arith.constant 0 : index
    %115 = vector.load %arg4[%c1_84, %c0_85, %c0_86] : memref<4x8x16xf32, #tpu.memory_space<vmem>>, vector<1x8x16xf32>
    %116 = vector.shape_cast %115 : vector<1x8x16xf32> to vector<8x16xf32>
    %cst_87 = arith.constant dense<0.000000e+00> : vector<8x16xf32>
    %117 = tpu.matmul %114, %116, %cst_87 {dimension_numbers = #tpu.dot_dimension_numbers<[1], [0], [0], [1], [0, 0, 1, 1], [], []>} : vector<8x8xf32>, vector<8x16xf32>, vector<8x16xf32> -> vector<8x16xf32>
    %118 = arith.addf %107, %117 : vector<8x16xf32>
    %c10 = arith.constant 10 : index
    %c0_88 = arith.constant 0 : index
    %c0_89 = arith.constant 0 : index
    %119 = vector.load %arg1[%c10, %c0_88, %c0_89] : memref<16x8x16xf32, #tpu.memory_space<vmem>>, vector<1x8x16xf32>
    %120 = vector.shape_cast %119 : vector<1x8x16xf32> to vector<8x16xf32>
    %cst_90 = arith.constant dense<0.000000e+00> : vector<8x8xf32>
    %121 = tpu.matmul %120, %0, %cst_90 {dimension_numbers = #tpu.dot_dimension_numbers<[1], [0], [0], [1], [0, 0, 1, 1], [], []>} : vector<8x16xf32>, vector<16x8xf32>, vector<8x8xf32> -> vector<8x8xf32>
    %122 = vector.broadcast %1 : vector<1x8xf32> to vector<8x8xf32>
    %123 = arith.addf %121, %122 : vector<8x8xf32>
    %cst_91 = arith.constant 0.000000e+00 : f32
    %124 = vector.broadcast %cst_91 : f32 to vector<8x8xf32>
    %125 = arith.maximumf %123, %124 : vector<8x8xf32>
    %c2_92 = arith.constant 2 : index
    %c0_93 = arith.constant 0 : index
    %c0_94 = arith.constant 0 : index
    %126 = vector.load %arg4[%c2_92, %c0_93, %c0_94] : memref<4x8x16xf32, #tpu.memory_space<vmem>>, vector<1x8x16xf32>
    %127 = vector.shape_cast %126 : vector<1x8x16xf32> to vector<8x16xf32>
    %cst_95 = arith.constant dense<0.000000e+00> : vector<8x16xf32>
    %128 = tpu.matmul %125, %127, %cst_95 {dimension_numbers = #tpu.dot_dimension_numbers<[1], [0], [0], [1], [0, 0, 1, 1], [], []>} : vector<8x8xf32>, vector<8x16xf32>, vector<8x16xf32> -> vector<8x16xf32>
    %129 = arith.addf %118, %128 : vector<8x16xf32>
    %c14 = arith.constant 14 : index
    %c0_96 = arith.constant 0 : index
    %c0_97 = arith.constant 0 : index
    %130 = vector.load %arg1[%c14, %c0_96, %c0_97] : memref<16x8x16xf32, #tpu.memory_space<vmem>>, vector<1x8x16xf32>
    %131 = vector.shape_cast %130 : vector<1x8x16xf32> to vector<8x16xf32>
    %cst_98 = arith.constant dense<0.000000e+00> : vector<8x8xf32>
    %132 = tpu.matmul %131, %0, %cst_98 {dimension_numbers = #tpu.dot_dimension_numbers<[1], [0], [0], [1], [0, 0, 1, 1], [], []>} : vector<8x16xf32>, vector<16x8xf32>, vector<8x8xf32> -> vector<8x8xf32>
    %133 = vector.broadcast %1 : vector<1x8xf32> to vector<8x8xf32>
    %134 = arith.addf %132, %133 : vector<8x8xf32>
    %cst_99 = arith.constant 0.000000e+00 : f32
    %135 = vector.broadcast %cst_99 : f32 to vector<8x8xf32>
    %136 = arith.maximumf %134, %135 : vector<8x8xf32>
    %c3_100 = arith.constant 3 : index
    %c0_101 = arith.constant 0 : index
    %c0_102 = arith.constant 0 : index
    %137 = vector.load %arg4[%c3_100, %c0_101, %c0_102] : memref<4x8x16xf32, #tpu.memory_space<vmem>>, vector<1x8x16xf32>
    %138 = vector.shape_cast %137 : vector<1x8x16xf32> to vector<8x16xf32>
    %cst_103 = arith.constant dense<0.000000e+00> : vector<8x16xf32>
    %139 = tpu.matmul %136, %138, %cst_103 {dimension_numbers = #tpu.dot_dimension_numbers<[1], [0], [0], [1], [0, 0, 1, 1], [], []>} : vector<8x8xf32>, vector<8x16xf32>, vector<8x16xf32> -> vector<8x16xf32>
    %140 = arith.addf %129, %139 : vector<8x16xf32>
    %141 = vector.broadcast %2 : vector<1x16xf32> to vector<8x16xf32>
    %142 = arith.addf %140, %141 : vector<8x16xf32>
    %cst_104 = arith.constant 0.000000e+00 : f32
    %143 = vector.broadcast %cst_104 : f32 to vector<8x16xf32>
    %144 = arith.maximumf %142, %143 : vector<8x16xf32>
    %c3_105 = arith.constant 3 : index
    %c0_106 = arith.constant 0 : index
    %c0_107 = arith.constant 0 : index
    %145 = vector.load %arg1[%c3_105, %c0_106, %c0_107] : memref<16x8x16xf32, #tpu.memory_space<vmem>>, vector<1x8x16xf32>
    %146 = vector.shape_cast %145 : vector<1x8x16xf32> to vector<8x16xf32>
    %cst_108 = arith.constant dense<0.000000e+00> : vector<8x8xf32>
    %147 = tpu.matmul %146, %0, %cst_108 {dimension_numbers = #tpu.dot_dimension_numbers<[1], [0], [0], [1], [0, 0, 1, 1], [], []>} : vector<8x16xf32>, vector<16x8xf32>, vector<8x8xf32> -> vector<8x8xf32>
    %148 = vector.broadcast %1 : vector<1x8xf32> to vector<8x8xf32>
    %149 = arith.addf %147, %148 : vector<8x8xf32>
    %cst_109 = arith.constant 0.000000e+00 : f32
    %150 = vector.broadcast %cst_109 : f32 to vector<8x8xf32>
    %151 = arith.maximumf %149, %150 : vector<8x8xf32>
    %c0_110 = arith.constant 0 : index
    %c0_111 = arith.constant 0 : index
    %c0_112 = arith.constant 0 : index
    %152 = vector.load %arg4[%c0_110, %c0_111, %c0_112] : memref<4x8x16xf32, #tpu.memory_space<vmem>>, vector<1x8x16xf32>
    %153 = vector.shape_cast %152 : vector<1x8x16xf32> to vector<8x16xf32>
    %cst_113 = arith.constant dense<0.000000e+00> : vector<8x16xf32>
    %154 = tpu.matmul %151, %153, %cst_113 {dimension_numbers = #tpu.dot_dimension_numbers<[1], [0], [0], [1], [0, 0, 1, 1], [], []>} : vector<8x8xf32>, vector<8x16xf32>, vector<8x16xf32> -> vector<8x16xf32>
    %c7 = arith.constant 7 : index
    %c0_114 = arith.constant 0 : index
    %c0_115 = arith.constant 0 : index
    %155 = vector.load %arg1[%c7, %c0_114, %c0_115] : memref<16x8x16xf32, #tpu.memory_space<vmem>>, vector<1x8x16xf32>
    %156 = vector.shape_cast %155 : vector<1x8x16xf32> to vector<8x16xf32>
    %cst_116 = arith.constant dense<0.000000e+00> : vector<8x8xf32>
    %157 = tpu.matmul %156, %0, %cst_116 {dimension_numbers = #tpu.dot_dimension_numbers<[1], [0], [0], [1], [0, 0, 1, 1], [], []>} : vector<8x16xf32>, vector<16x8xf32>, vector<8x8xf32> -> vector<8x8xf32>
    %158 = vector.broadcast %1 : vector<1x8xf32> to vector<8x8xf32>
    %159 = arith.addf %157, %158 : vector<8x8xf32>
    %cst_117 = arith.constant 0.000000e+00 : f32
    %160 = vector.broadcast %cst_117 : f32 to vector<8x8xf32>
    %161 = arith.maximumf %159, %160 : vector<8x8xf32>
    %c1_118 = arith.constant 1 : index
    %c0_119 = arith.constant 0 : index
    %c0_120 = arith.constant 0 : index
    %162 = vector.load %arg4[%c1_118, %c0_119, %c0_120] : memref<4x8x16xf32, #tpu.memory_space<vmem>>, vector<1x8x16xf32>
    %163 = vector.shape_cast %162 : vector<1x8x16xf32> to vector<8x16xf32>
    %cst_121 = arith.constant dense<0.000000e+00> : vector<8x16xf32>
    %164 = tpu.matmul %161, %163, %cst_121 {dimension_numbers = #tpu.dot_dimension_numbers<[1], [0], [0], [1], [0, 0, 1, 1], [], []>} : vector<8x8xf32>, vector<8x16xf32>, vector<8x16xf32> -> vector<8x16xf32>
    %165 = arith.addf %154, %164 : vector<8x16xf32>
    %c11 = arith.constant 11 : index
    %c0_122 = arith.constant 0 : index
    %c0_123 = arith.constant 0 : index
    %166 = vector.load %arg1[%c11, %c0_122, %c0_123] : memref<16x8x16xf32, #tpu.memory_space<vmem>>, vector<1x8x16xf32>
    %167 = vector.shape_cast %166 : vector<1x8x16xf32> to vector<8x16xf32>
    %cst_124 = arith.constant dense<0.000000e+00> : vector<8x8xf32>
    %168 = tpu.matmul %167, %0, %cst_124 {dimension_numbers = #tpu.dot_dimension_numbers<[1], [0], [0], [1], [0, 0, 1, 1], [], []>} : vector<8x16xf32>, vector<16x8xf32>, vector<8x8xf32> -> vector<8x8xf32>
    %169 = vector.broadcast %1 : vector<1x8xf32> to vector<8x8xf32>
    %170 = arith.addf %168, %169 : vector<8x8xf32>
    %cst_125 = arith.constant 0.000000e+00 : f32
    %171 = vector.broadcast %cst_125 : f32 to vector<8x8xf32>
    %172 = arith.maximumf %170, %171 : vector<8x8xf32>
    %c2_126 = arith.constant 2 : index
    %c0_127 = arith.constant 0 : index
    %c0_128 = arith.constant 0 : index
    %173 = vector.load %arg4[%c2_126, %c0_127, %c0_128] : memref<4x8x16xf32, #tpu.memory_space<vmem>>, vector<1x8x16xf32>
    %174 = vector.shape_cast %173 : vector<1x8x16xf32> to vector<8x16xf32>
    %cst_129 = arith.constant dense<0.000000e+00> : vector<8x16xf32>
    %175 = tpu.matmul %172, %174, %cst_129 {dimension_numbers = #tpu.dot_dimension_numbers<[1], [0], [0], [1], [0, 0, 1, 1], [], []>} : vector<8x8xf32>, vector<8x16xf32>, vector<8x16xf32> -> vector<8x16xf32>
    %176 = arith.addf %165, %175 : vector<8x16xf32>
    %c15 = arith.constant 15 : index
    %c0_130 = arith.constant 0 : index
    %c0_131 = arith.constant 0 : index
    %177 = vector.load %arg1[%c15, %c0_130, %c0_131] : memref<16x8x16xf32, #tpu.memory_space<vmem>>, vector<1x8x16xf32>
    %178 = vector.shape_cast %177 : vector<1x8x16xf32> to vector<8x16xf32>
    %cst_132 = arith.constant dense<0.000000e+00> : vector<8x8xf32>
    %179 = tpu.matmul %178, %0, %cst_132 {dimension_numbers = #tpu.dot_dimension_numbers<[1], [0], [0], [1], [0, 0, 1, 1], [], []>} : vector<8x16xf32>, vector<16x8xf32>, vector<8x8xf32> -> vector<8x8xf32>
    %180 = vector.broadcast %1 : vector<1x8xf32> to vector<8x8xf32>
    %181 = arith.addf %179, %180 : vector<8x8xf32>
    %cst_133 = arith.constant 0.000000e+00 : f32
    %182 = vector.broadcast %cst_133 : f32 to vector<8x8xf32>
    %183 = arith.maximumf %181, %182 : vector<8x8xf32>
    %c3_134 = arith.constant 3 : index
    %c0_135 = arith.constant 0 : index
    %c0_136 = arith.constant 0 : index
    %184 = vector.load %arg4[%c3_134, %c0_135, %c0_136] : memref<4x8x16xf32, #tpu.memory_space<vmem>>, vector<1x8x16xf32>
    %185 = vector.shape_cast %184 : vector<1x8x16xf32> to vector<8x16xf32>
    %cst_137 = arith.constant dense<0.000000e+00> : vector<8x16xf32>
    %186 = tpu.matmul %183, %185, %cst_137 {dimension_numbers = #tpu.dot_dimension_numbers<[1], [0], [0], [1], [0, 0, 1, 1], [], []>} : vector<8x8xf32>, vector<8x16xf32>, vector<8x16xf32> -> vector<8x16xf32>
    %187 = arith.addf %176, %186 : vector<8x16xf32>
    %188 = vector.broadcast %2 : vector<1x16xf32> to vector<8x16xf32>
    %189 = arith.addf %187, %188 : vector<8x16xf32>
    %cst_138 = arith.constant 0.000000e+00 : f32
    %190 = vector.broadcast %cst_138 : f32 to vector<8x16xf32>
    %191 = arith.maximumf %189, %190 : vector<8x16xf32>
    %c0_139 = arith.constant 0 : index
    %c0_140 = arith.constant 0 : index
    %c0_141 = arith.constant 0 : index
    %192 = vector.load %arg6[%c0_139, %c0_140, %c0_141] : memref<4x16x32xf32, #tpu.memory_space<vmem>>, vector<1x16x32xf32>
    %193 = vector.shape_cast %192 : vector<1x16x32xf32> to vector<16x32xf32>
    %cst_142 = arith.constant dense<0.000000e+00> : vector<8x32xf32>
    %194 = tpu.matmul %50, %193, %cst_142 {dimension_numbers = #tpu.dot_dimension_numbers<[1], [0], [0], [1], [0, 0, 1, 1], [], []>} : vector<8x16xf32>, vector<16x32xf32>, vector<8x32xf32> -> vector<8x32xf32>
    %c1_143 = arith.constant 1 : index
    %c0_144 = arith.constant 0 : index
    %c0_145 = arith.constant 0 : index
    %195 = vector.load %arg6[%c1_143, %c0_144, %c0_145] : memref<4x16x32xf32, #tpu.memory_space<vmem>>, vector<1x16x32xf32>
    %196 = vector.shape_cast %195 : vector<1x16x32xf32> to vector<16x32xf32>
    %cst_146 = arith.constant dense<0.000000e+00> : vector<8x32xf32>
    %197 = tpu.matmul %97, %196, %cst_146 {dimension_numbers = #tpu.dot_dimension_numbers<[1], [0], [0], [1], [0, 0, 1, 1], [], []>} : vector<8x16xf32>, vector<16x32xf32>, vector<8x32xf32> -> vector<8x32xf32>
    %198 = arith.addf %194, %197 : vector<8x32xf32>
    %c2_147 = arith.constant 2 : index
    %c0_148 = arith.constant 0 : index
    %c0_149 = arith.constant 0 : index
    %199 = vector.load %arg6[%c2_147, %c0_148, %c0_149] : memref<4x16x32xf32, #tpu.memory_space<vmem>>, vector<1x16x32xf32>
    %200 = vector.shape_cast %199 : vector<1x16x32xf32> to vector<16x32xf32>
    %cst_150 = arith.constant dense<0.000000e+00> : vector<8x32xf32>
    %201 = tpu.matmul %144, %200, %cst_150 {dimension_numbers = #tpu.dot_dimension_numbers<[1], [0], [0], [1], [0, 0, 1, 1], [], []>} : vector<8x16xf32>, vector<16x32xf32>, vector<8x32xf32> -> vector<8x32xf32>
    %202 = arith.addf %198, %201 : vector<8x32xf32>
    %c3_151 = arith.constant 3 : index
    %c0_152 = arith.constant 0 : index
    %c0_153 = arith.constant 0 : index
    %203 = vector.load %arg6[%c3_151, %c0_152, %c0_153] : memref<4x16x32xf32, #tpu.memory_space<vmem>>, vector<1x16x32xf32>
    %204 = vector.shape_cast %203 : vector<1x16x32xf32> to vector<16x32xf32>
    %cst_154 = arith.constant dense<0.000000e+00> : vector<8x32xf32>
    %205 = tpu.matmul %191, %204, %cst_154 {dimension_numbers = #tpu.dot_dimension_numbers<[1], [0], [0], [1], [0, 0, 1, 1], [], []>} : vector<8x16xf32>, vector<16x32xf32>, vector<8x32xf32> -> vector<8x32xf32>
    %206 = arith.addf %202, %205 : vector<8x32xf32>
    %207 = vector.broadcast %3 : vector<1x32xf32> to vector<8x32xf32>
    %208 = arith.addf %206, %207 : vector<8x32xf32>
    %cst_155 = arith.constant 0.000000e+00 : f32
    %209 = vector.broadcast %cst_155 : f32 to vector<8x32xf32>
    %210 = arith.maximumf %208, %209 : vector<8x32xf32>
    %211 = vector.extract_strided_slice %210 {offsets = [0, 0], sizes = [2, 32], strides = [1, 1]} : vector<8x32xf32> to vector<2x32xf32>
    %c0_156 = arith.constant 0 : index
    %c0_157 = arith.constant 0 : index
    %c0_158 = arith.constant 0 : index
    %212 = vector.load %arg8[%c0_156, %c0_157, %c0_158] : memref<4x32x16xf32, #tpu.memory_space<vmem>>, vector<1x32x16xf32>
    %213 = vector.shape_cast %212 : vector<1x32x16xf32> to vector<32x16xf32>
    %cst_159 = arith.constant dense<0.000000e+00> : vector<2x16xf32>
    %214 = tpu.matmul %211, %213, %cst_159 {dimension_numbers = #tpu.dot_dimension_numbers<[1], [0], [0], [1], [0, 0, 1, 1], [], []>} : vector<2x32xf32>, vector<32x16xf32>, vector<2x16xf32> -> vector<2x16xf32>
    %215 = vector.extract_strided_slice %210 {offsets = [2, 0], sizes = [2, 32], strides = [1, 1]} : vector<8x32xf32> to vector<2x32xf32>
    %c1_160 = arith.constant 1 : index
    %c0_161 = arith.constant 0 : index
    %c0_162 = arith.constant 0 : index
    %216 = vector.load %arg8[%c1_160, %c0_161, %c0_162] : memref<4x32x16xf32, #tpu.memory_space<vmem>>, vector<1x32x16xf32>
    %217 = vector.shape_cast %216 : vector<1x32x16xf32> to vector<32x16xf32>
    %cst_163 = arith.constant dense<0.000000e+00> : vector<2x16xf32>
    %218 = tpu.matmul %215, %217, %cst_163 {dimension_numbers = #tpu.dot_dimension_numbers<[1], [0], [0], [1], [0, 0, 1, 1], [], []>} : vector<2x32xf32>, vector<32x16xf32>, vector<2x16xf32> -> vector<2x16xf32>
    %219 = arith.addf %214, %218 : vector<2x16xf32>
    %220 = vector.extract_strided_slice %210 {offsets = [4, 0], sizes = [2, 32], strides = [1, 1]} : vector<8x32xf32> to vector<2x32xf32>
    %c2_164 = arith.constant 2 : index
    %c0_165 = arith.constant 0 : index
    %c0_166 = arith.constant 0 : index
    %221 = vector.load %arg8[%c2_164, %c0_165, %c0_166] : memref<4x32x16xf32, #tpu.memory_space<vmem>>, vector<1x32x16xf32>
    %222 = vector.shape_cast %221 : vector<1x32x16xf32> to vector<32x16xf32>
    %cst_167 = arith.constant dense<0.000000e+00> : vector<2x16xf32>
    %223 = tpu.matmul %220, %222, %cst_167 {dimension_numbers = #tpu.dot_dimension_numbers<[1], [0], [0], [1], [0, 0, 1, 1], [], []>} : vector<2x32xf32>, vector<32x16xf32>, vector<2x16xf32> -> vector<2x16xf32>
    %224 = arith.addf %219, %223 : vector<2x16xf32>
    %225 = vector.extract_strided_slice %210 {offsets = [6, 0], sizes = [2, 32], strides = [1, 1]} : vector<8x32xf32> to vector<2x32xf32>
    %c3_168 = arith.constant 3 : index
    %c0_169 = arith.constant 0 : index
    %c0_170 = arith.constant 0 : index
    %226 = vector.load %arg8[%c3_168, %c0_169, %c0_170] : memref<4x32x16xf32, #tpu.memory_space<vmem>>, vector<1x32x16xf32>
    %227 = vector.shape_cast %226 : vector<1x32x16xf32> to vector<32x16xf32>
    %cst_171 = arith.constant dense<0.000000e+00> : vector<2x16xf32>
    %228 = tpu.matmul %225, %227, %cst_171 {dimension_numbers = #tpu.dot_dimension_numbers<[1], [0], [0], [1], [0, 0, 1, 1], [], []>} : vector<2x32xf32>, vector<32x16xf32>, vector<2x16xf32> -> vector<2x16xf32>
    %229 = arith.addf %224, %228 : vector<2x16xf32>
    %c0_172 = arith.constant 0 : index
    %c0_173 = arith.constant 0 : index
    %c0_174 = arith.constant 0 : index
    %230 = vector.load %arg9[%c0_172, %c0_173, %c0_174] : memref<1x2x16xf32, #tpu.memory_space<vmem>>, vector<1x2x16xf32>
    %231 = vector.shape_cast %230 : vector<1x2x16xf32> to vector<2x16xf32>
    %232 = vector.shape_cast %229 : vector<2x16xf32> to vector<1x2x16xf32>
    tpu.vector_store %arg9[%c0_172, %c0_173, %c0_174], %232 {strides = array<i32>} : memref<1x2x16xf32, #tpu.memory_space<vmem>>, vector<1x2x16xf32>,
    return
  }
  func.func @transform_0(%arg0: i32) -> (i32, i32, i32) {
    %c0_i32 = arith.constant 0 : i32
    %c0_i32_0 = arith.constant 0 : i32
    %c0_i32_1 = arith.constant 0 : i32
    return %c0_i32, %arg0, %c0_i32_0 : i32, i32, i32
  }
  func.func @transform_1(%arg0: i32) -> (i32, i32) {
    %c0_i32 = arith.constant 0 : i32
    %c0_i32_0 = arith.constant 0 : i32
    %c0_i32_1 = arith.constant 0 : i32
    return %c0_i32, %c0_i32_0 : i32, i32
  }
  func.func @transform_2(%arg0: i32) -> (i32, i32) {
    %c0_i32 = arith.constant 0 : i32
    %c0_i32_0 = arith.constant 0 : i32
    %c0_i32_1 = arith.constant 0 : i32
    return %c0_i32, %c0_i32_0 : i32, i32
  }
  func.func @transform_3(%arg0: i32) -> (i32, i32, i32) {
    %c0_i32 = arith.constant 0 : i32
    %c0_i32_0 = arith.constant 0 : i32
    %c0_i32_1 = arith.constant 0 : i32
    %c0_i32_2 = arith.constant 0 : i32
    return %c0_i32, %c0_i32_0, %c0_i32_1 : i32, i32, i32
  }
  func.func @transform_4(%arg0: i32) -> (i32, i32) {
    %c0_i32 = arith.constant 0 : i32
    %c0_i32_0 = arith.constant 0 : i32
    %c0_i32_1 = arith.constant 0 : i32
    return %c0_i32, %c0_i32_0 : i32, i32
  }
  func.func @transform_5(%arg0: i32) -> (i32, i32, i32) {
    %c0_i32 = arith.constant 0 : i32
    %c0_i32_0 = arith.constant 0 : i32
    %c0_i32_1 = arith.constant 0 : i32
    %c0_i32_2 = arith.constant 0 : i32
    return %c0_i32, %c0_i32_0, %c0_i32_1 : i32, i32, i32
  }
  func.func @transform_6(%arg0: i32) -> (i32, i32) {
    %c0_i32 = arith.constant 0 : i32
    %c0_i32_0 = arith.constant 0 : i32
    %c0_i32_1 = arith.constant 0 : i32
    return %c0_i32, %c0_i32_0 : i32, i32
  }
  func.func @transform_7(%arg0: i32) -> (i32, i32, i32) {
    %c0_i32 = arith.constant 0 : i32
    %c0_i32_0 = arith.constant 0 : i32
    %c0_i32_1 = arith.constant 0 : i32
    return %arg0, %c0_i32, %c0_i32_0 : i32, i32, i32
  }
  func.func @transform_8(%arg0: i32) -> (i32, i32, i32) {
    %c0_i32 = arith.constant 0 : i32
    %c0_i32_0 = arith.constant 0 : i32
    %c0_i32_1 = arith.constant 0 : i32
    return %arg0, %c0_i32, %c0_i32_0 : i32, i32, i32
  }
}

</mosaic_0001>

<llo_original>
// kernel: image_encoder_forward.1
$region0: #{image_encoder_forward.1}
  #allocation0 [shape = 'u32[]', space=smem, size = 0x4, offset = 0x4, fixed_abs, tag = 'smem constant byte address 0x4 - core index']
  #allocation1 [shape = 'u32[72,128]{1,0:T(1,128)}', space=vmem, size = 0x9000, scoped, tag = 'internal scratch']
  %s0 = inlined_call_operand.vmem [shape: f32[16,8,16], index: 0, kind: input, shape index: {}]
  %s1 = inlined_call_operand.vmem [shape: f32[16,8], index: 1, kind: input, shape index: {}]
  %s2 = inlined_call_operand.vmem [shape: f32[1,8], index: 2, kind: input, shape index: {}]
  %s3 = inlined_call_operand.vmem [shape: f32[4,8,16], index: 3, kind: input, shape index: {}]
  %s4 = inlined_call_operand.vmem [shape: f32[1,16], index: 4, kind: input, shape index: {}]
  %s5 = inlined_call_operand.vmem [shape: f32[4,16,32], index: 5, kind: input, shape index: {}]
  %s6 = inlined_call_operand.vmem [shape: f32[1,32], index: 6, kind: input, shape index: {}]
  %s7 = inlined_call_operand.vmem [shape: f32[4,32,16], index: 7, kind: input, shape index: {}]
  %s8 = inlined_call_operand.vmem [shape: f32[1,2,16], index: 8, kind: output, shape index: {}]
  %s9 = sld [smem:[#allocation0]]
  $region42: #{image_encoder_forward.1} parent=0
    _
  %s11 = ssub.s32 1, %s9
  %s12 = scalar_select 0, %s11, %s9
  // Predicated region
  $region2: #{image_encoder_forward.1} parent=0 // pred_check
    _
  $region3: #{image_encoder_forward.1} parent=0 // pred_check_branch
    %14 = sbr.rel (0) target = $region5
  $region4: #{image_encoder_forward.1} parent=0 // pred_region
    _
  $region5: #{image_encoder_forward.1} parent=0 // pred_fallthru
    _
  // Predicated region
  $region6: #{image_encoder_forward.1} parent=0 // pred_check
    _
  $region7: #{image_encoder_forward.1} parent=0 // pred_check_branch
    %16 = sbr.rel (0) target = $region9
  $region8: #{image_encoder_forward.1} parent=0 // pred_region
    _
  $region9: #{image_encoder_forward.1} parent=0 // pred_fallthru
    _
  // Predicated region
  $region10: #{image_encoder_forward.1} parent=0 // pred_check
    _
  $region11: #{image_encoder_forward.1} parent=0 // pred_check_branch
    %18 = sbr.rel (0) target = $region13
  $region12: #{image_encoder_forward.1} parent=0 // pred_region
    _
  $region13: #{image_encoder_forward.1} parent=0 // pred_fallthru
    _
  // Predicated region
  $region14: #{image_encoder_forward.1} parent=0 // pred_check
    _
  $region15: #{image_encoder_forward.1} parent=0 // pred_check_branch
    %20 = sbr.rel (0) target = $region17
  $region16: #{image_encoder_forward.1} parent=0 // pred_region
    _
  $region17: #{image_encoder_forward.1} parent=0 // pred_fallthru
    _
  // Predicated region
  $region18: #{image_encoder_forward.1} parent=0 // pred_check
    _
  $region19: #{image_encoder_forward.1} parent=0 // pred_check_branch
    %22 = sbr.rel (0) target = $region21
  $region20: #{image_encoder_forward.1} parent=0 // pred_region
    _
  $region21: #{image_encoder_forward.1} parent=0 // pred_fallthru
    _
  // Predicated region
  $region22: #{image_encoder_forward.1} parent=0 // pred_check
    _
  $region23: #{image_encoder_forward.1} parent=0 // pred_check_branch
    %24 = sbr.rel (0) target = $region25
  $region24: #{image_encoder_forward.1} parent=0 // pred_region
    _
  $region25: #{image_encoder_forward.1} parent=0 // pred_fallthru
    _
  // Predicated region
  $region26: #{image_encoder_forward.1} parent=0 // pred_check
    _
  $region27: #{image_encoder_forward.1} parent=0 // pred_check_branch
    %26 = sbr.rel (0) target = $region29
  $region28: #{image_encoder_forward.1} parent=0 // pred_region
    _
  $region29: #{image_encoder_forward.1} parent=0 // pred_fallthru
    _
  // Predicated region
  $region30: #{image_encoder_forward.1} parent=0 // pred_check
    _
  $region31: #{image_encoder_forward.1} parent=0 // pred_check_branch
    %28 = sbr.rel (0) target = $region33
  $region32: #{image_encoder_forward.1} parent=0 // pred_region
    _
  $region33: #{image_encoder_forward.1} parent=0 // pred_fallthru
    _
  %v29 = vld [vmem:[%s1] sm:$0xff]
  %v30 = vld [vmem:[%s1 + $0x8] sm:$0xff]
  %v31 = vld [vmem:[%s2] sm:$0x1]
  %v32 = vld [vmem:[%s4] sm:$0x1]
  %v33 = vld [vmem:[%s6] sm:$0x1]
  %v34 = vld [vmem:[%s0] sm:$0xff]
  %v36 = vperm.slane %v31, 0
  %vm38 = vcmask 130048
  %v40 = vsel %vm38, %v34, 0
  %42 = vmatpush.msra.mxu0 0.0
  %43 = vmatpush.msra.mxu0 0.0
  %44 = vmatpush.msra.mxu0 0.0
  %45 = vmatpush.msra.mxu0 0.0
  %46 = vmatpush.msra.mxu0 0.0
  %47 = vmatpush.msra.mxu0 0.0
  %48 = vmatpush.msra.mxu0 0.0
  %49 = vmatpush.msra.mxu0 0.0
  %50 = vmatpush.msra.mxu0 0.0
  %51 = vmatpush.msra.mxu0 0.0
  %52 = vmatpush.msra.mxu0 0.0
  %53 = vmatpush.msra.mxu0 0.0
  %54 = vmatpush.msra.mxu0 0.0
  %55 = vmatpush.msra.mxu0 0.0
  %56 = vmatpush.msra.mxu0 %v30
  %57 = vmatpush.msra.mxu0 %v29
  %58 = vmatmul.f32.gmra.mxu0 %v40
  %v59 = vpop.f32.mrf.mxu0
  %v60 = vadd.f32 %v36, %v59
  %61 = vdwg.mxu0
  %v62 = vmax.f32 %v60, 0.0
  %v63 = vld [vmem:[%s3] sm:$0xff]
  %s64 = scalar_lea.vmem %s0, 32
  %v65 = vld [vmem:[%s64] sm:$0xff]
  %v67 = vsel %vm38, %v65, 0
  %69 = vmatpush.msra.mxu0 0.0
  %70 = vmatpush.msra.mxu0 0.0
  %71 = vmatpush.msra.mxu0 0.0
  %72 = vmatpush.msra.mxu0 0.0
  %73 = vmatpush.msra.mxu0 0.0
  %74 = vmatpush.msra.mxu0 0.0
  %75 = vmatpush.msra.mxu0 0.0
  %76 = vmatpush.msra.mxu0 0.0
  %77 = vmatpush.msra.mxu0 0.0
  %78 = vmatpush.msra.mxu0 0.0
  %79 = vmatpush.msra.mxu0 0.0
  %80 = vmatpush.msra.mxu0 0.0
  %81 = vmatpush.msra.mxu0 0.0
  %82 = vmatpush.msra.mxu0 0.0
  %83 = vmatpush.msra.mxu0 %v30
  %84 = vmatpush.msra.mxu0 %v29
  %85 = vmatmul.f32.gmra.mxu0 %v67
  %v86 = vpop.f32.mrf.mxu0
  %v87 = vadd.f32 %v36, %v86
  %88 = vdwg.mxu0
  %v89 = vmax.f32 %v87, 0.0
  %s90 = scalar_lea.vmem %s3, 8
  %v91 = vld [vmem:[%s90] sm:$0xff]
  %vm92 = vcmask 64512
  %v94 = vsel %vm92, %v89, 0
  %96 = vmatpush.msra.mxu0 0.0
  %97 = vmatpush.msra.mxu0 0.0
  %98 = vmatpush.msra.mxu0 0.0
  %99 = vmatpush.msra.mxu0 0.0
  %100 = vmatpush.msra.mxu0 0.0
  %101 = vmatpush.msra.mxu0 0.0
  %102 = vmatpush.msra.mxu0 0.0
  %103 = vmatpush.msra.mxu0 0.0
  %104 = vmatpush.msra.mxu0 0.0
  %105 = vmatpush.msra.mxu0 0.0
  %106 = vmatpush.msra.mxu0 0.0
  %107 = vmatpush.msra.mxu0 0.0
  %108 = vmatpush.msra.mxu0 0.0
  %109 = vmatpush.msra.mxu0 0.0
  %110 = vmatpush.msra.mxu0 0.0
  %111 = vmatpush.msra.mxu0 %v91
  %112 = vmatmul.f32.gmra.mxu0 %v94
  %v113 = vpop.f32.mrf.mxu0
  %v114 = vadd.f32 0.0, %v113
  %115 = vdwg.mxu0
  %v117 = vsel %vm92, %v62, 0
  %119 = vmatpush.msra.mxu0 0.0
  %120 = vmatpush.msra.mxu0 0.0
  %121 = vmatpush.msra.mxu0 0.0
  %122 = vmatpush.msra.mxu0 0.0
  %123 = vmatpush.msra.mxu0 0.0
  %124 = vmatpush.msra.mxu0 0.0
  %125 = vmatpush.msra.mxu0 0.0
  %126 = vmatpush.msra.mxu0 0.0
  %127 = vmatpush.msra.mxu0 0.0
  %128 = vmatpush.msra.mxu0 0.0
  %129 = vmatpush.msra.mxu0 0.0
  %130 = vmatpush.msra.mxu0 0.0
  %131 = vmatpush.msra.mxu0 0.0
  %132 = vmatpush.msra.mxu0 0.0
  %133 = vmatpush.msra.mxu0 0.0
  %134 = vmatpush.msra.mxu0 %v63
  %135 = vmatmul.f32.gmra.mxu0 %v117
  %v136 = vpop.f32.mrf.mxu0
  %v137 = vadd.f32 %v114, %v136
  %138 = vdwg.mxu0
  %s139 = scalar_lea.vmem %s0, 64
  %v140 = vld [vmem:[%s139] sm:$0xff]
  %v142 = vsel %vm38, %v140, 0
  %144 = vmatpush.msra.mxu0 0.0
  %145 = vmatpush.msra.mxu0 0.0
  %146 = vmatpush.msra.mxu0 0.0
  %147 = vmatpush.msra.mxu0 0.0
  %148 = vmatpush.msra.mxu0 0.0
  %149 = vmatpush.msra.mxu0 0.0
  %150 = vmatpush.msra.mxu0 0.0
  %151 = vmatpush.msra.mxu0 0.0
  %152 = vmatpush.msra.mxu0 0.0
  %153 = vmatpush.msra.mxu0 0.0
  %154 = vmatpush.msra.mxu0 0.0
  %155 = vmatpush.msra.mxu0 0.0
  %156 = vmatpush.msra.mxu0 0.0
  %157 = vmatpush.msra.mxu0 0.0
  %158 = vmatpush.msra.mxu0 %v30
  %159 = vmatpush.msra.mxu0 %v29
  %160 = vmatmul.f32.gmra.mxu0 %v142
  %v161 = vpop.f32.mrf.mxu0
  %v162 = vadd.f32 %v36, %v161
  %163 = vdwg.mxu0
  %v164 = vmax.f32 %v162, 0.0
  %s165 = scalar_lea.vmem %s3, 16
  %v166 = vld [vmem:[%s165] sm:$0xff]
  %v168 = vsel %vm92, %v164, 0
  %170 = vmatpush.msra.mxu0 0.0
  %171 = vmatpush.msra.mxu0 0.0
  %172 = vmatpush.msra.mxu0 0.0
  %173 = vmatpush.msra.mxu0 0.0
  %174 = vmatpush.msra.mxu0 0.0
  %175 = vmatpush.msra.mxu0 0.0
  %176 = vmatpush.msra.mxu0 0.0
  %177 = vmatpush.msra.mxu0 0.0
  %178 = vmatpush.msra.mxu0 0.0
  %179 = vmatpush.msra.mxu0 0.0
  %180 = vmatpush.msra.mxu0 0.0
  %181 = vmatpush.msra.mxu0 0.0
  %182 = vmatpush.msra.mxu0 0.0
  %183 = vmatpush.msra.mxu0 0.0
  %184 = vmatpush.msra.mxu0 0.0
  %185 = vmatpush.msra.mxu0 %v166
  %186 = vmatmul.f32.gmra.mxu0 %v168
  %v187 = vpop.f32.mrf.mxu0
  %v188 = vadd.f32 0.0, %v187
  %189 = vdwg.mxu0
  %v190 = vadd.f32 %v137, %v188
  %s191 = scalar_lea.vmem %s0, 96
  %v192 = vld [vmem:[%s191] sm:$0xff]
  %v194 = vsel %vm38, %v192, 0
  %196 = vmatpush.msra.mxu0 0.0
  %197 = vmatpush.msra.mxu0 0.0
  %198 = vmatpush.msra.mxu0 0.0
  %199 = vmatpush.msra.mxu0 0.0
  %200 = vmatpush.msra.mxu0 0.0
  %201 = vmatpush.msra.mxu0 0.0
  %202 = vmatpush.msra.mxu0 0.0
  %203 = vmatpush.msra.mxu0 0.0
  %204 = vmatpush.msra.mxu0 0.0
  %205 = vmatpush.msra.mxu0 0.0
  %206 = vmatpush.msra.mxu0 0.0
  %207 = vmatpush.msra.mxu0 0.0
  %208 = vmatpush.msra.mxu0 0.0
  %209 = vmatpush.msra.mxu0 0.0
  %210 = vmatpush.msra.mxu0 %v30
  %211 = vmatpush.msra.mxu0 %v29
  %212 = vmatmul.f32.gmra.mxu0 %v194
  %v213 = vpop.f32.mrf.mxu0
  %v214 = vadd.f32 %v36, %v213
  %215 = vdwg.mxu0
  %v216 = vmax.f32 %v214, 0.0
  %s217 = scalar_lea.vmem %s3, 24
  %v218 = vld [vmem:[%s217] sm:$0xff]
  %v220 = vsel %vm92, %v216, 0
  %222 = vmatpush.msra.mxu0 0.0
  %223 = vmatpush.msra.mxu0 0.0
  %224 = vmatpush.msra.mxu0 0.0
  %225 = vmatpush.msra.mxu0 0.0
  %226 = vmatpush.msra.mxu0 0.0
  %227 = vmatpush.msra.mxu0 0.0
  %228 = vmatpush.msra.mxu0 0.0
  %229 = vmatpush.msra.mxu0 0.0
  %230 = vmatpush.msra.mxu0 0.0
  %231 = vmatpush.msra.mxu0 0.0
  %232 = vmatpush.msra.mxu0 0.0
  %233 = vmatpush.msra.mxu0 0.0
  %234 = vmatpush.msra.mxu0 0.0
  %235 = vmatpush.msra.mxu0 0.0
  %236 = vmatpush.msra.mxu0 0.0
  %237 = vmatpush.msra.mxu0 %v218
  %238 = vmatmul.f32.gmra.mxu0 %v220
  %v239 = vpop.f32.mrf.mxu0
  %v240 = vadd.f32 0.0, %v239
  %241 = vdwg.mxu0
  %v242 = vadd.f32 %v190, %v240
  %v244 = vperm.slane %v32, 0
  %v246 = vadd.f32 %v242, %v244
  %v247 = vmax.f32 %v246, 0.0
  %s248 = scalar_lea.vmem %s0, 8
  %v249 = vld [vmem:[%s248] sm:$0xff]
  %v251 = vsel %vm38, %v249, 0
  %253 = vmatpush.msra.mxu0 0.0
  %254 = vmatpush.msra.mxu0 0.0
  %255 = vmatpush.msra.mxu0 0.0
  %256 = vmatpush.msra.mxu0 0.0
  %257 = vmatpush.msra.mxu0 0.0
  %258 = vmatpush.msra.mxu0 0.0
  %259 = vmatpush.msra.mxu0 0.0
  %260 = vmatpush.msra.mxu0 0.0
  %261 = vmatpush.msra.mxu0 0.0
  %262 = vmatpush.msra.mxu0 0.0
  %263 = vmatpush.msra.mxu0 0.0
  %264 = vmatpush.msra.mxu0 0.0
  %265 = vmatpush.msra.mxu0 0.0
  %266 = vmatpush.msra.mxu0 0.0
  %267 = vmatpush.msra.mxu0 %v30
  %268 = vmatpush.msra.mxu0 %v29
  %269 = vmatmul.f32.gmra.mxu0 %v251
  %v270 = vpop.f32.mrf.mxu0
  %v271 = vadd.f32 %v36, %v270
  %272 = vdwg.mxu0
  %v273 = vmax.f32 %v271, 0.0
  %s274 = scalar_lea.vmem %s0, 40
  %v275 = vld [vmem:[%s274] sm:$0xff]
  %v277 = vsel %vm38, %v275, 0
  %279 = vmatpush.msra.mxu0 0.0
  %280 = vmatpush.msra.mxu0 0.0
  %281 = vmatpush.msra.mxu0 0.0
  %282 = vmatpush.msra.mxu0 0.0
  %283 = vmatpush.msra.mxu0 0.0
  %284 = vmatpush.msra.mxu0 0.0
  %285 = vmatpush.msra.mxu0 0.0
  %286 = vmatpush.msra.mxu0 0.0
  %287 = vmatpush.msra.mxu0 0.0
  %288 = vmatpush.msra.mxu0 0.0
  %289 = vmatpush.msra.mxu0 0.0
  %290 = vmatpush.msra.mxu0 0.0
  %291 = vmatpush.msra.mxu0 0.0
  %292 = vmatpush.msra.mxu0 0.0
  %293 = vmatpush.msra.mxu0 %v30
  %294 = vmatpush.msra.mxu0 %v29
  %295 = vmatmul.f32.gmra.mxu0 %v277
  %v296 = vpop.f32.mrf.mxu0
  %v297 = vadd.f32 %v36, %v296
  %298 = vdwg.mxu0
  %v299 = vmax.f32 %v297, 0.0
  %v301 = vsel %vm92, %v299, 0
  %303 = vmatpush.msra.mxu0 0.0
  %304 = vmatpush.msra.mxu0 0.0
  %305 = vmatpush.msra.mxu0 0.0
  %306 = vmatpush.msra.mxu0 0.0
  %307 = vmatpush.msra.mxu0 0.0
  %308 = vmatpush.msra.mxu0 0.0
  %309 = vmatpush.msra.mxu0 0.0
  %310 = vmatpush.msra.mxu0 0.0
  %311 = vmatpush.msra.mxu0 0.0
  %312 = vmatpush.msra.mxu0 0.0
  %313 = vmatpush.msra.mxu0 0.0
  %314 = vmatpush.msra.mxu0 0.0
  %315 = vmatpush.msra.mxu0 0.0
  %316 = vmatpush.msra.mxu0 0.0
  %317 = vmatpush.msra.mxu0 0.0
  %318 = vmatpush.msra.mxu0 %v91
  %319 = vmatmul.f32.gmra.mxu0 %v301
  %v320 = vpop.f32.mrf.mxu0
  %v321 = vadd.f32 0.0, %v320
  %322 = vdwg.mxu0
  %v324 = vsel %vm92, %v273, 0
  %326 = vmatpush.msra.mxu0 0.0
  %327 = vmatpush.msra.mxu0 0.0
  %328 = vmatpush.msra.mxu0 0.0
  %329 = vmatpush.msra.mxu0 0.0
  %330 = vmatpush.msra.mxu0 0.0
  %331 = vmatpush.msra.mxu0 0.0
  %332 = vmatpush.msra.mxu0 0.0
  %333 = vmatpush.msra.mxu0 0.0
  %334 = vmatpush.msra.mxu0 0.0
  %335 = vmatpush.msra.mxu0 0.0
  %336 = vmatpush.msra.mxu0 0.0
  %337 = vmatpush.msra.mxu0 0.0
  %338 = vmatpush.msra.mxu0 0.0
  %339 = vmatpush.msra.mxu0 0.0
  %340 = vmatpush.msra.mxu0 0.0
  %341 = vmatpush.msra.mxu0 %v63
  %342 = vmatmul.f32.gmra.mxu0 %v324
  %v343 = vpop.f32.mrf.mxu0
  %v344 = vadd.f32 %v321, %v343
  %345 = vdwg.mxu0
  %s346 = scalar_lea.vmem %s0, 72
  %v347 = vld [vmem:[%s346] sm:$0xff]
  %v349 = vsel %vm38, %v347, 0
  %351 = vmatpush.msra.mxu0 0.0
  %352 = vmatpush.msra.mxu0 0.0
  %353 = vmatpush.msra.mxu0 0.0
  %354 = vmatpush.msra.mxu0 0.0
  %355 = vmatpush.msra.mxu0 0.0
  %356 = vmatpush.msra.mxu0 0.0
  %357 = vmatpush.msra.mxu0 0.0
  %358 = vmatpush.msra.mxu0 0.0
  %359 = vmatpush.msra.mxu0 0.0
  %360 = vmatpush.msra.mxu0 0.0
  %361 = vmatpush.msra.mxu0 0.0
  %362 = vmatpush.msra.mxu0 0.0
  %363 = vmatpush.msra.mxu0 0.0
  %364 = vmatpush.msra.mxu0 0.0
  %365 = vmatpush.msra.mxu0 %v30
  %366 = vmatpush.msra.mxu0 %v29
  %367 = vmatmul.f32.gmra.mxu0 %v349
  %v368 = vpop.f32.mrf.mxu0
  %v369 = vadd.f32 %v36, %v368
  %370 = vdwg.mxu0
  %v371 = vmax.f32 %v369, 0.0
  %v373 = vsel %vm92, %v371, 0
  %375 = vmatpush.msra.mxu0 0.0
  %376 = vmatpush.msra.mxu0 0.0
  %377 = vmatpush.msra.mxu0 0.0
  %378 = vmatpush.msra.mxu0 0.0
  %379 = vmatpush.msra.mxu0 0.0
  %380 = vmatpush.msra.mxu0 0.0
  %381 = vmatpush.msra.mxu0 0.0
  %382 = vmatpush.msra.mxu0 0.0
  %383 = vmatpush.msra.mxu0 0.0
  %384 = vmatpush.msra.mxu0 0.0
  %385 = vmatpush.msra.mxu0 0.0
  %386 = vmatpush.msra.mxu0 0.0
  %387 = vmatpush.msra.mxu0 0.0
  %388 = vmatpush.msra.mxu0 0.0
  %389 = vmatpush.msra.mxu0 0.0
  %390 = vmatpush.msra.mxu0 %v166
  %391 = vmatmul.f32.gmra.mxu0 %v373
  %v392 = vpop.f32.mrf.mxu0
  %v393 = vadd.f32 0.0, %v392
  %394 = vdwg.mxu0
  %v395 = vadd.f32 %v344, %v393
  %s396 = scalar_lea.vmem %s0, 104
  %v397 = vld [vmem:[%s396] sm:$0xff]
  %v399 = vsel %vm38, %v397, 0
  %401 = vmatpush.msra.mxu0 0.0
  %402 = vmatpush.msra.mxu0 0.0
  %403 = vmatpush.msra.mxu0 0.0
  %404 = vmatpush.msra.mxu0 0.0
  %405 = vmatpush.msra.mxu0 0.0
  %406 = vmatpush.msra.mxu0 0.0
  %407 = vmatpush.msra.mxu0 0.0
  %408 = vmatpush.msra.mxu0 0.0
  %409 = vmatpush.msra.mxu0 0.0
  %410 = vmatpush.msra.mxu0 0.0
  %411 = vmatpush.msra.mxu0 0.0
  %412 = vmatpush.msra.mxu0 0.0
  %413 = vmatpush.msra.mxu0 0.0
  %414 = vmatpush.msra.mxu0 0.0
  %415 = vmatpush.msra.mxu0 %v30
  %416 = vmatpush.msra.mxu0 %v29
  %417 = vmatmul.f32.gmra.mxu0 %v399
  %v418 = vpop.f32.mrf.mxu0
  %v419 = vadd.f32 %v36, %v418
  %420 = vdwg.mxu0
  %v421 = vmax.f32 %v419, 0.0
  %v423 = vsel %vm92, %v421, 0
  %425 = vmatpush.msra.mxu0 0.0
  %426 = vmatpush.msra.mxu0 0.0
  %427 = vmatpush.msra.mxu0 0.0
  %428 = vmatpush.msra.mxu0 0.0
  %429 = vmatpush.msra.mxu0 0.0
  %430 = vmatpush.msra.mxu0 0.0
  %431 = vmatpush.msra.mxu0 0.0
  %432 = vmatpush.msra.mxu0 0.0
  %433 = vmatpush.msra.mxu0 0.0
  %434 = vmatpush.msra.mxu0 0.0
  %435 = vmatpush.msra.mxu0 0.0
  %436 = vmatpush.msra.mxu0 0.0
  %437 = vmatpush.msra.mxu0 0.0
  %438 = vmatpush.msra.mxu0 0.0
  %439 = vmatpush.msra.mxu0 0.0
  %440 = vmatpush.msra.mxu0 %v218
  %441 = vmatmul.f32.gmra.mxu0 %v423
  %v442 = vpop.f32.mrf.mxu0
  %v443 = vadd.f32 0.0, %v442
  %444 = vdwg.mxu0
  %v445 = vadd.f32 %v395, %v443
  %v446 = vadd.f32 %v445, %v244
  %v447 = vmax.f32 %v446, 0.0
  %s448 = scalar_lea.vmem %s0, 16
  %v449 = vld [vmem:[%s448] sm:$0xff]
  %v451 = vsel %vm38, %v449, 0
  %453 = vmatpush.msra.mxu0 0.0
  %454 = vmatpush.msra.mxu0 0.0
  %455 = vmatpush.msra.mxu0 0.0
  %456 = vmatpush.msra.mxu0 0.0
  %457 = vmatpush.msra.mxu0 0.0
  %458 = vmatpush.msra.mxu0 0.0
  %459 = vmatpush.msra.mxu0 0.0
  %460 = vmatpush.msra.mxu0 0.0
  %461 = vmatpush.msra.mxu0 0.0
  %462 = vmatpush.msra.mxu0 0.0
  %463 = vmatpush.msra.mxu0 0.0
  %464 = vmatpush.msra.mxu0 0.0
  %465 = vmatpush.msra.mxu0 0.0
  %466 = vmatpush.msra.mxu0 0.0
  %467 = vmatpush.msra.mxu0 %v30
  %468 = vmatpush.msra.mxu0 %v29
  %469 = vmatmul.f32.gmra.mxu0 %v451
  %v470 = vpop.f32.mrf.mxu0
  %v471 = vadd.f32 %v36, %v470
  %472 = vdwg.mxu0
  %v473 = vmax.f32 %v471, 0.0
  %s474 = scalar_lea.vmem %s0, 48
  %v475 = vld [vmem:[%s474] sm:$0xff]
  %v477 = vsel %vm38, %v475, 0
  %479 = vmatpush.msra.mxu0 0.0
  %480 = vmatpush.msra.mxu0 0.0
  %481 = vmatpush.msra.mxu0 0.0
  %482 = vmatpush.msra.mxu0 0.0
  %483 = vmatpush.msra.mxu0 0.0
  %484 = vmatpush.msra.mxu0 0.0
  %485 = vmatpush.msra.mxu0 0.0
  %486 = vmatpush.msra.mxu0 0.0
  %487 = vmatpush.msra.mxu0 0.0
  %488 = vmatpush.msra.mxu0 0.0
  %489 = vmatpush.msra.mxu0 0.0
  %490 = vmatpush.msra.mxu0 0.0
  %491 = vmatpush.msra.mxu0 0.0
  %492 = vmatpush.msra.mxu0 0.0
  %493 = vmatpush.msra.mxu0 %v30
  %494 = vmatpush.msra.mxu0 %v29
  %495 = vmatmul.f32.gmra.mxu0 %v477
  %v496 = vpop.f32.mrf.mxu0
  %v497 = vadd.f32 %v36, %v496
  %498 = vdwg.mxu0
  %v499 = vmax.f32 %v497, 0.0
  %v501 = vsel %vm92, %v499, 0
  %503 = vmatpush.msra.mxu0 0.0
  %504 = vmatpush.msra.mxu0 0.0
  %505 = vmatpush.msra.mxu0 0.0
  %506 = vmatpush.msra.mxu0 0.0
  %507 = vmatpush.msra.mxu0 0.0
  %508 = vmatpush.msra.mxu0 0.0
  %509 = vmatpush.msra.mxu0 0.0
  %510 = vmatpush.msra.mxu0 0.0
  %511 = vmatpush.msra.mxu0 0.0
  %512 = vmatpush.msra.mxu0 0.0
  %513 = vmatpush.msra.mxu0 0.0
  %514 = vmatpush.msra.mxu0 0.0
  %515 = vmatpush.msra.mxu0 0.0
  %516 = vmatpush.msra.mxu0 0.0
  %517 = vmatpush.msra.mxu0 0.0
  %518 = vmatpush.msra.mxu0 %v91
  %519 = vmatmul.f32.gmra.mxu0 %v501
  %v520 = vpop.f32.mrf.mxu0
  %v521 = vadd.f32 0.0, %v520
  %522 = vdwg.mxu0
  %v524 = vsel %vm92, %v473, 0
  %526 = vmatpush.msra.mxu0 0.0
  %527 = vmatpush.msra.mxu0 0.0
  %528 = vmatpush.msra.mxu0 0.0
  %529 = vmatpush.msra.mxu0 0.0
  %530 = vmatpush.msra.mxu0 0.0
  %531 = vmatpush.msra.mxu0 0.0
  %532 = vmatpush.msra.mxu0 0.0
  %533 = vmatpush.msra.mxu0 0.0
  %534 = vmatpush.msra.mxu0 0.0
  %535 = vmatpush.msra.mxu0 0.0
  %536 = vmatpush.msra.mxu0 0.0
  %537 = vmatpush.msra.mxu0 0.0
  %538 = vmatpush.msra.mxu0 0.0
  %539 = vmatpush.msra.mxu0 0.0
  %540 = vmatpush.msra.mxu0 0.0
  %541 = vmatpush.msra.mxu0 %v63
  %542 = vmatmul.f32.gmra.mxu0 %v524
  %v543 = vpop.f32.mrf.mxu0
  %v544 = vadd.f32 %v521, %v543
  %545 = vdwg.mxu0
  %s546 = scalar_lea.vmem %s0, 80
  %v547 = vld [vmem:[%s546] sm:$0xff]
  %v549 = vsel %vm38, %v547, 0
  %551 = vmatpush.msra.mxu0 0.0
  %552 = vmatpush.msra.mxu0 0.0
  %553 = vmatpush.msra.mxu0 0.0
  %554 = vmatpush.msra.mxu0 0.0
  %555 = vmatpush.msra.mxu0 0.0
  %556 = vmatpush.msra.mxu0 0.0
  %557 = vmatpush.msra.mxu0 0.0
  %558 = vmatpush.msra.mxu0 0.0
  %559 = vmatpush.msra.mxu0 0.0
  %560 = vmatpush.msra.mxu0 0.0
  %561 = vmatpush.msra.mxu0 0.0
  %562 = vmatpush.msra.mxu0 0.0
  %563 = vmatpush.msra.mxu0 0.0
  %564 = vmatpush.msra.mxu0 0.0
  %565 = vmatpush.msra.mxu0 %v30
  %566 = vmatpush.msra.mxu0 %v29
  %567 = vmatmul.f32.gmra.mxu0 %v549
  %v568 = vpop.f32.mrf.mxu0
  %v569 = vadd.f32 %v36, %v568
  %570 = vdwg.mxu0
  %v571 = vmax.f32 %v569, 0.0
  %v573 = vsel %vm92, %v571, 0
  %575 = vmatpush.msra.mxu0 0.0
  %576 = vmatpush.msra.mxu0 0.0
  %577 = vmatpush.msra.mxu0 0.0
  %578 = vmatpush.msra.mxu0 0.0
  %579 = vmatpush.msra.mxu0 0.0
  %580 = vmatpush.msra.mxu0 0.0
  %581 = vmatpush.msra.mxu0 0.0
  %582 = vmatpush.msra.mxu0 0.0
  %583 = vmatpush.msra.mxu0 0.0
  %584 = vmatpush.msra.mxu0 0.0
  %585 = vmatpush.msra.mxu0 0.0
  %586 = vmatpush.msra.mxu0 0.0
  %587 = vmatpush.msra.mxu0 0.0
  %588 = vmatpush.msra.mxu0 0.0
  %589 = vmatpush.msra.mxu0 0.0
  %590 = vmatpush.msra.mxu0 %v166
  %591 = vmatmul.f32.gmra.mxu0 %v573
  %v592 = vpop.f32.mrf.mxu0
  %v593 = vadd.f32 0.0, %v592
  %594 = vdwg.mxu0
  %v595 = vadd.f32 %v544, %v593
  %s596 = scalar_lea.vmem %s0, 112
  %v597 = vld [vmem:[%s596] sm:$0xff]
  %v599 = vsel %vm38, %v597, 0
  %601 = vmatpush.msra.mxu0 0.0
  %602 = vmatpush.msra.mxu0 0.0
  %603 = vmatpush.msra.mxu0 0.0
  %604 = vmatpush.msra.mxu0 0.0
  %605 = vmatpush.msra.mxu0 0.0
  %606 = vmatpush.msra.mxu0 0.0
  %607 = vmatpush.msra.mxu0 0.0
  %608 = vmatpush.msra.mxu0 0.0
  %609 = vmatpush.msra.mxu0 0.0
  %610 = vmatpush.msra.mxu0 0.0
  %611 = vmatpush.msra.mxu0 0.0
  %612 = vmatpush.msra.mxu0 0.0
  %613 = vmatpush.msra.mxu0 0.0
  %614 = vmatpush.msra.mxu0 0.0
  %615 = vmatpush.msra.mxu0 %v30
  %616 = vmatpush.msra.mxu0 %v29
  %617 = vmatmul.f32.gmra.mxu0 %v599
  %v618 = vpop.f32.mrf.mxu0
  %v619 = vadd.f32 %v36, %v618
  %620 = vdwg.mxu0
  %v621 = vmax.f32 %v619, 0.0
  %v623 = vsel %vm92, %v621, 0
  %625 = vmatpush.msra.mxu0 0.0
  %626 = vmatpush.msra.mxu0 0.0
  %627 = vmatpush.msra.mxu0 0.0
  %628 = vmatpush.msra.mxu0 0.0
  %629 = vmatpush.msra.mxu0 0.0
  %630 = vmatpush.msra.mxu0 0.0
  %631 = vmatpush.msra.mxu0 0.0
  %632 = vmatpush.msra.mxu0 0.0
  %633 = vmatpush.msra.mxu0 0.0
  %634 = vmatpush.msra.mxu0 0.0
  %635 = vmatpush.msra.mxu0 0.0
  %636 = vmatpush.msra.mxu0 0.0
  %637 = vmatpush.msra.mxu0 0.0
  %638 = vmatpush.msra.mxu0 0.0
  %639 = vmatpush.msra.mxu0 0.0
  %640 = vmatpush.msra.mxu0 %v218
  %641 = vmatmul.f32.gmra.mxu0 %v623
  %v642 = vpop.f32.mrf.mxu0
  %v643 = vadd.f32 0.0, %v642
  %644 = vdwg.mxu0
  %v645 = vadd.f32 %v595, %v643
  %v646 = vadd.f32 %v645, %v244
  %v647 = vmax.f32 %v646, 0.0
  %s648 = scalar_lea.vmem %s0, 24
  %v649 = vld [vmem:[%s648] sm:$0xff]
  %v651 = vsel %vm38, %v649, 0
  %653 = vmatpush.msra.mxu0 0.0
  %654 = vmatpush.msra.mxu0 0.0
  %655 = vmatpush.msra.mxu0 0.0
  %656 = vmatpush.msra.mxu0 0.0
  %657 = vmatpush.msra.mxu0 0.0
  %658 = vmatpush.msra.mxu0 0.0
  %659 = vmatpush.msra.mxu0 0.0
  %660 = vmatpush.msra.mxu0 0.0
  %661 = vmatpush.msra.mxu0 0.0
  %662 = vmatpush.msra.mxu0 0.0
  %663 = vmatpush.msra.mxu0 0.0
  %664 = vmatpush.msra.mxu0 0.0
  %665 = vmatpush.msra.mxu0 0.0
  %666 = vmatpush.msra.mxu0 0.0
  %667 = vmatpush.msra.mxu0 %v30
  %668 = vmatpush.msra.mxu0 %v29
  %669 = vmatmul.f32.gmra.mxu0 %v651
  %v670 = vpop.f32.mrf.mxu0
  %v671 = vadd.f32 %v36, %v670
  %672 = vdwg.mxu0
  %v673 = vmax.f32 %v671, 0.0
  %s674 = scalar_lea.vmem %s0, 56
  %v675 = vld [vmem:[%s674] sm:$0xff]
  %v677 = vsel %vm38, %v675, 0
  %679 = vmatpush.msra.mxu0 0.0
  %680 = vmatpush.msra.mxu0 0.0
  %681 = vmatpush.msra.mxu0 0.0
  %682 = vmatpush.msra.mxu0 0.0
  %683 = vmatpush.msra.mxu0 0.0
  %684 = vmatpush.msra.mxu0 0.0
  %685 = vmatpush.msra.mxu0 0.0
  %686 = vmatpush.msra.mxu0 0.0
  %687 = vmatpush.msra.mxu0 0.0
  %688 = vmatpush.msra.mxu0 0.0
  %689 = vmatpush.msra.mxu0 0.0
  %690 = vmatpush.msra.mxu0 0.0
  %691 = vmatpush.msra.mxu0 0.0
  %692 = vmatpush.msra.mxu0 0.0
  %693 = vmatpush.msra.mxu0 %v30
  %694 = vmatpush.msra.mxu0 %v29
  %695 = vmatmul.f32.gmra.mxu0 %v677
  %v696 = vpop.f32.mrf.mxu0
  %v697 = vadd.f32 %v36, %v696
  %698 = vdwg.mxu0
  %v699 = vmax.f32 %v697, 0.0
  %v701 = vsel %vm92, %v699, 0
  %703 = vmatpush.msra.mxu0 0.0
  %704 = vmatpush.msra.mxu0 0.0
  %705 = vmatpush.msra.mxu0 0.0
  %706 = vmatpush.msra.mxu0 0.0
  %707 = vmatpush.msra.mxu0 0.0
  %708 = vmatpush.msra.mxu0 0.0
  %709 = vmatpush.msra.mxu0 0.0
  %710 = vmatpush.msra.mxu0 0.0
  %711 = vmatpush.msra.mxu0 0.0
  %712 = vmatpush.msra.mxu0 0.0
  %713 = vmatpush.msra.mxu0 0.0
  %714 = vmatpush.msra.mxu0 0.0
  %715 = vmatpush.msra.mxu0 0.0
  %716 = vmatpush.msra.mxu0 0.0
  %717 = vmatpush.msra.mxu0 0.0
  %718 = vmatpush.msra.mxu0 %v91
  %719 = vmatmul.f32.gmra.mxu0 %v701
  %v720 = vpop.f32.mrf.mxu0
  %v721 = vadd.f32 0.0, %v720
  %722 = vdwg.mxu0
  %v724 = vsel %vm92, %v673, 0
  %726 = vmatpush.msra.mxu0 0.0
  %727 = vmatpush.msra.mxu0 0.0
  %728 = vmatpush.msra.mxu0 0.0
  %729 = vmatpush.msra.mxu0 0.0
  %730 = vmatpush.msra.mxu0 0.0
  %731 = vmatpush.msra.mxu0 0.0
  %732 = vmatpush.msra.mxu0 0.0
  %733 = vmatpush.msra.mxu0 0.0
  %734 = vmatpush.msra.mxu0 0.0
  %735 = vmatpush.msra.mxu0 0.0
  %736 = vmatpush.msra.mxu0 0.0
  %737 = vmatpush.msra.mxu0 0.0
  %738 = vmatpush.msra.mxu0 0.0
  %739 = vmatpush.msra.mxu0 0.0
  %740 = vmatpush.msra.mxu0 0.0
  %741 = vmatpush.msra.mxu0 %v63
  %742 = vmatmul.f32.gmra.mxu0 %v724
  %v743 = vpop.f32.mrf.mxu0
  %v744 = vadd.f32 %v721, %v743
  %745 = vdwg.mxu0
  %s746 = scalar_lea.vmem %s0, 88
  %v747 = vld [vmem:[%s746] sm:$0xff]
  %v749 = vsel %vm38, %v747, 0
  %751 = vmatpush.msra.mxu0 0.0
  %752 = vmatpush.msra.mxu0 0.0
  %753 = vmatpush.msra.mxu0 0.0
  %754 = vmatpush.msra.mxu0 0.0
  %755 = vmatpush.msra.mxu0 0.0
  %756 = vmatpush.msra.mxu0 0.0
  %757 = vmatpush.msra.mxu0 0.0
  %758 = vmatpush.msra.mxu0 0.0
  %759 = vmatpush.msra.mxu0 0.0
  %760 = vmatpush.msra.mxu0 0.0
  %761 = vmatpush.msra.mxu0 0.0
  %762 = vmatpush.msra.mxu0 0.0
  %763 = vmatpush.msra.mxu0 0.0
  %764 = vmatpush.msra.mxu0 0.0
  %765 = vmatpush.msra.mxu0 %v30
  %766 = vmatpush.msra.mxu0 %v29
  %767 = vmatmul.f32.gmra.mxu0 %v749
  %v768 = vpop.f32.mrf.mxu0
  %v769 = vadd.f32 %v36, %v768
  %770 = vdwg.mxu0
  %v771 = vmax.f32 %v769, 0.0
  %v773 = vsel %vm92, %v771, 0
  %775 = vmatpush.msra.mxu0 0.0
  %776 = vmatpush.msra.mxu0 0.0
  %777 = vmatpush.msra.mxu0 0.0
  %778 = vmatpush.msra.mxu0 0.0
  %779 = vmatpush.msra.mxu0 0.0
  %780 = vmatpush.msra.mxu0 0.0
  %781 = vmatpush.msra.mxu0 0.0
  %782 = vmatpush.msra.mxu0 0.0
  %783 = vmatpush.msra.mxu0 0.0
  %784 = vmatpush.msra.mxu0 0.0
  %785 = vmatpush.msra.mxu0 0.0
  %786 = vmatpush.msra.mxu0 0.0
  %787 = vmatpush.msra.mxu0 0.0
  %788 = vmatpush.msra.mxu0 0.0
  %789 = vmatpush.msra.mxu0 0.0
  %790 = vmatpush.msra.mxu0 %v166
  %791 = vmatmul.f32.gmra.mxu0 %v773
  %v792 = vpop.f32.mrf.mxu0
  %v793 = vadd.f32 0.0, %v792
  %794 = vdwg.mxu0
  %v795 = vadd.f32 %v744, %v793
  %s796 = scalar_lea.vmem %s0, 120
  %v797 = vld [vmem:[%s796] sm:$0xff]
  %v799 = vsel %vm38, %v797, 0
  %801 = vmatpush.msra.mxu0 0.0
  %802 = vmatpush.msra.mxu0 0.0
  %803 = vmatpush.msra.mxu0 0.0
  %804 = vmatpush.msra.mxu0 0.0
  %805 = vmatpush.msra.mxu0 0.0
  %806 = vmatpush.msra.mxu0 0.0
  %807 = vmatpush.msra.mxu0 0.0
  %808 = vmatpush.msra.mxu0 0.0
  %809 = vmatpush.msra.mxu0 0.0
  %810 = vmatpush.msra.mxu0 0.0
  %811 = vmatpush.msra.mxu0 0.0
  %812 = vmatpush.msra.mxu0 0.0
  %813 = vmatpush.msra.mxu0 0.0
  %814 = vmatpush.msra.mxu0 0.0
  %815 = vmatpush.msra.mxu0 %v30
  %816 = vmatpush.msra.mxu0 %v29
  %817 = vmatmul.f32.gmra.mxu0 %v799
  %v818 = vpop.f32.mrf.mxu0
  %v819 = vadd.f32 %v36, %v818
  %820 = vdwg.mxu0
  %v821 = vmax.f32 %v819, 0.0
  %v823 = vsel %vm92, %v821, 0
  %825 = vmatpush.msra.mxu0 0.0
  %826 = vmatpush.msra.mxu0 0.0
  %827 = vmatpush.msra.mxu0 0.0
  %828 = vmatpush.msra.mxu0 0.0
  %829 = vmatpush.msra.mxu0 0.0
  %830 = vmatpush.msra.mxu0 0.0
  %831 = vmatpush.msra.mxu0 0.0
  %832 = vmatpush.msra.mxu0 0.0
  %833 = vmatpush.msra.mxu0 0.0
  %834 = vmatpush.msra.mxu0 0.0
  %835 = vmatpush.msra.mxu0 0.0
  %836 = vmatpush.msra.mxu0 0.0
  %837 = vmatpush.msra.mxu0 0.0
  %838 = vmatpush.msra.mxu0 0.0
  %839 = vmatpush.msra.mxu0 0.0
  %840 = vmatpush.msra.mxu0 %v218
  %841 = vmatmul.f32.gmra.mxu0 %v823
  %v842 = vpop.f32.mrf.mxu0
  %v843 = vadd.f32 0.0, %v842
  %844 = vdwg.mxu0
  %v845 = vadd.f32 %v795, %v843
  %v846 = vadd.f32 %v845, %v244
  %v847 = vmax.f32 %v846, 0.0
  %v848 = vld [vmem:[%s5] sm:$0xff]
  %v849 = vld [vmem:[%s5 + $0x8] sm:$0xff]
  %s850 = scalar_lea.vmem %s5, 16
  %v851 = vld [vmem:[%s850] sm:$0xff]
  %v852 = vld [vmem:[%s850 + $0x8] sm:$0xff]
  %v854 = vsel %vm38, %v447, 0
  %856 = vmatpush.msra.mxu0 0.0
  %857 = vmatpush.msra.mxu0 0.0
  %858 = vmatpush.msra.mxu0 0.0
  %859 = vmatpush.msra.mxu0 0.0
  %860 = vmatpush.msra.mxu0 0.0
  %861 = vmatpush.msra.mxu0 0.0
  %862 = vmatpush.msra.mxu0 0.0
  %863 = vmatpush.msra.mxu0 0.0
  %864 = vmatpush.msra.mxu0 0.0
  %865 = vmatpush.msra.mxu0 0.0
  %866 = vmatpush.msra.mxu0 0.0
  %867 = vmatpush.msra.mxu0 0.0
  %868 = vmatpush.msra.mxu0 0.0
  %869 = vmatpush.msra.mxu0 0.0
  %870 = vmatpush.msra.mxu0 %v852
  %871 = vmatpush.msra.mxu0 %v851
  %872 = vmatmul.f32.gmra.mxu0 %v854
  %v873 = vpop.f32.mrf.mxu0
  %v874 = vadd.f32 0.0, %v873
  %875 = vdwg.mxu0
  %v877 = vsel %vm38, %v247, 0
  %879 = vmatpush.msra.mxu0 0.0
  %880 = vmatpush.msra.mxu0 0.0
  %881 = vmatpush.msra.mxu0 0.0
  %882 = vmatpush.msra.mxu0 0.0
  %883 = vmatpush.msra.mxu0 0.0
  %884 = vmatpush.msra.mxu0 0.0
  %885 = vmatpush.msra.mxu0 0.0
  %886 = vmatpush.msra.mxu0 0.0
  %887 = vmatpush.msra.mxu0 0.0
  %888 = vmatpush.msra.mxu0 0.0
  %889 = vmatpush.msra.mxu0 0.0
  %890 = vmatpush.msra.mxu0 0.0
  %891 = vmatpush.msra.mxu0 0.0
  %892 = vmatpush.msra.mxu0 0.0
  %893 = vmatpush.msra.mxu0 %v849
  %894 = vmatpush.msra.mxu0 %v848
  %895 = vmatmul.f32.gmra.mxu0 %v877
  %v896 = vpop.f32.mrf.mxu0
  %v897 = vadd.f32 %v874, %v896
  %898 = vdwg.mxu0
  %s899 = scalar_lea.vmem %s5, 32
  %v900 = vld [vmem:[%s899] sm:$0xff]
  %v901 = vld [vmem:[%s899 + $0x8] sm:$0xff]
  %v903 = vsel %vm38, %v647, 0
  %905 = vmatpush.msra.mxu0 0.0
  %906 = vmatpush.msra.mxu0 0.0
  %907 = vmatpush.msra.mxu0 0.0
  %908 = vmatpush.msra.mxu0 0.0
  %909 = vmatpush.msra.mxu0 0.0
  %910 = vmatpush.msra.mxu0 0.0
  %911 = vmatpush.msra.mxu0 0.0
  %912 = vmatpush.msra.mxu0 0.0
  %913 = vmatpush.msra.mxu0 0.0
  %914 = vmatpush.msra.mxu0 0.0
  %915 = vmatpush.msra.mxu0 0.0
  %916 = vmatpush.msra.mxu0 0.0
  %917 = vmatpush.msra.mxu0 0.0
  %918 = vmatpush.msra.mxu0 0.0
  %919 = vmatpush.msra.mxu0 %v901
  %920 = vmatpush.msra.mxu0 %v900
  %921 = vmatmul.f32.gmra.mxu0 %v903
  %v922 = vpop.f32.mrf.mxu0
  %v923 = vadd.f32 0.0, %v922
  %924 = vdwg.mxu0
  %v925 = vadd.f32 %v897, %v923
  %s926 = scalar_lea.vmem %s5, 48
  %v927 = vld [vmem:[%s926] sm:$0xff]
  %v928 = vld [vmem:[%s926 + $0x8] sm:$0xff]
  %v930 = vsel %vm38, %v847, 0
  %932 = vmatpush.msra.mxu0 0.0
  %933 = vmatpush.msra.mxu0 0.0
  %934 = vmatpush.msra.mxu0 0.0
  %935 = vmatpush.msra.mxu0 0.0
  %936 = vmatpush.msra.mxu0 0.0
  %937 = vmatpush.msra.mxu0 0.0
  %938 = vmatpush.msra.mxu0 0.0
  %939 = vmatpush.msra.mxu0 0.0
  %940 = vmatpush.msra.mxu0 0.0
  %941 = vmatpush.msra.mxu0 0.0
  %942 = vmatpush.msra.mxu0 0.0
  %943 = vmatpush.msra.mxu0 0.0
  %944 = vmatpush.msra.mxu0 0.0
  %945 = vmatpush.msra.mxu0 0.0
  %946 = vmatpush.msra.mxu0 %v928
  %947 = vmatpush.msra.mxu0 %v927
  %948 = vmatmul.f32.gmra.mxu0 %v930
  %v949 = vpop.f32.mrf.mxu0
  %v950 = vadd.f32 0.0, %v949
  %951 = vdwg.mxu0
  %v952 = vadd.f32 %v925, %v950
  %v954 = vperm.slane %v33, 0
  %v956 = vadd.f32 %v952, %v954
  %v957 = vmax.f32 %v956, 0.0
  %v958 = vld [vmem:[%s7] sm:$0xff]
  %v959 = vld [vmem:[%s7 + $0x8] sm:$0xff]
  %v960 = vld [vmem:[%s7 + $0x10] sm:$0xff]
  %v961 = vld [vmem:[%s7 + $0x18] sm:$0xff]
  %s962 = scalar_lea.vmem %s7, 32
  %v963 = vld [vmem:[%s962] sm:$0xff]
  %v964 = vld [vmem:[%s962 + $0x8] sm:$0xff]
  %v965 = vld [vmem:[%s962 + $0x10] sm:$0xff]
  %v966 = vld [vmem:[%s962 + $0x18] sm:$0xff]
  %v968 = vrot.slane %v957, 2
  %vm969 = vcmask 261120
  %v970 = vsel %vm969, %v968, 0
  %972 = vmatpush.msra.mxu0 0.0
  %973 = vmatpush.msra.mxu0 0.0
  %974 = vmatpush.msra.mxu0 0.0
  %975 = vmatpush.msra.mxu0 0.0
  %976 = vmatpush.msra.mxu0 0.0
  %977 = vmatpush.msra.mxu0 0.0
  %978 = vmatpush.msra.mxu0 0.0
  %979 = vmatpush.msra.mxu0 0.0
  %980 = vmatpush.msra.mxu0 0.0
  %981 = vmatpush.msra.mxu0 0.0
  %982 = vmatpush.msra.mxu0 0.0
  %983 = vmatpush.msra.mxu0 0.0
  %984 = vmatpush.msra.mxu0 %v966
  %985 = vmatpush.msra.mxu0 %v965
  %986 = vmatpush.msra.mxu0 %v964
  %987 = vmatpush.msra.mxu0 %v963
  %988 = vmatmul.f32.gmra.mxu0 %v970
  %v989 = vpop.f32.mrf.mxu0
  %v990 = vadd.f32 0.0, %v989
  %991 = vdwg.mxu0
  %v992 = vsel %vm969, %v957, 0
  %994 = vmatpush.msra.mxu0 0.0
  %995 = vmatpush.msra.mxu0 0.0
  %996 = vmatpush.msra.mxu0 0.0
  %997 = vmatpush.msra.mxu0 0.0
  %998 = vmatpush.msra.mxu0 0.0
  %999 = vmatpush.msra.mxu0 0.0
  %1000 = vmatpush.msra.mxu0 0.0
  %1001 = vmatpush.msra.mxu0 0.0
  %1002 = vmatpush.msra.mxu0 0.0
  %1003 = vmatpush.msra.mxu0 0.0
  %1004 = vmatpush.msra.mxu0 0.0
  %1005 = vmatpush.msra.mxu0 0.0
  %1006 = vmatpush.msra.mxu0 %v961
  %1007 = vmatpush.msra.mxu0 %v960
  %1008 = vmatpush.msra.mxu0 %v959
  %1009 = vmatpush.msra.mxu0 %v958
  %1010 = vmatmul.f32.gmra.mxu0 %v992
  %v1011 = vpop.f32.mrf.mxu0
  %v1012 = vadd.f32 %v990, %v1011
  %1013 = vdwg.mxu0
  %s1014 = scalar_lea.vmem %s7, 64
  %v1015 = vld [vmem:[%s1014] sm:$0xff]
  %v1016 = vld [vmem:[%s1014 + $0x8] sm:$0xff]
  %v1017 = vld [vmem:[%s1014 + $0x10] sm:$0xff]
  %v1018 = vld [vmem:[%s1014 + $0x18] sm:$0xff]
  %v1019 = vrot.slane %v957, 4
  %v1020 = vsel %vm969, %v1019, 0
  %1022 = vmatpush.msra.mxu0 0.0
  %1023 = vmatpush.msra.mxu0 0.0
  %1024 = vmatpush.msra.mxu0 0.0
  %1025 = vmatpush.msra.mxu0 0.0
  %1026 = vmatpush.msra.mxu0 0.0
  %1027 = vmatpush.msra.mxu0 0.0
  %1028 = vmatpush.msra.mxu0 0.0
  %1029 = vmatpush.msra.mxu0 0.0
  %1030 = vmatpush.msra.mxu0 0.0
  %1031 = vmatpush.msra.mxu0 0.0
  %1032 = vmatpush.msra.mxu0 0.0
  %1033 = vmatpush.msra.mxu0 0.0
  %1034 = vmatpush.msra.mxu0 %v1018
  %1035 = vmatpush.msra.mxu0 %v1017
  %1036 = vmatpush.msra.mxu0 %v1016
  %1037 = vmatpush.msra.mxu0 %v1015
  %1038 = vmatmul.f32.gmra.mxu0 %v1020
  %v1039 = vpop.f32.mrf.mxu0
  %v1040 = vadd.f32 0.0, %v1039
  %1041 = vdwg.mxu0
  %v1042 = vadd.f32 %v1012, %v1040
  %s1043 = scalar_lea.vmem %s7, 96
  %v1044 = vld [vmem:[%s1043] sm:$0xff]
  %v1045 = vld [vmem:[%s1043 + $0x8] sm:$0xff]
  %v1046 = vld [vmem:[%s1043 + $0x10] sm:$0xff]
  %v1047 = vld [vmem:[%s1043 + $0x18] sm:$0xff]
  %v1048 = vrot.slane %v957, 6
  %v1049 = vsel %vm969, %v1048, 0
  %1051 = vmatpush.msra.mxu0 0.0
  %1052 = vmatpush.msra.mxu0 0.0
  %1053 = vmatpush.msra.mxu0 0.0
  %1054 = vmatpush.msra.mxu0 0.0
  %1055 = vmatpush.msra.mxu0 0.0
  %1056 = vmatpush.msra.mxu0 0.0
  %1057 = vmatpush.msra.mxu0 0.0
  %1058 = vmatpush.msra.mxu0 0.0
  %1059 = vmatpush.msra.mxu0 0.0
  %1060 = vmatpush.msra.mxu0 0.0
  %1061 = vmatpush.msra.mxu0 0.0
  %1062 = vmatpush.msra.mxu0 0.0
  %1063 = vmatpush.msra.mxu0 %v1047
  %1064 = vmatpush.msra.mxu0 %v1046
  %1065 = vmatpush.msra.mxu0 %v1045
  %1066 = vmatpush.msra.mxu0 %v1044
  %1067 = vmatmul.f32.gmra.mxu0 %v1049
  %v1068 = vpop.f32.mrf.mxu0
  %v1069 = vadd.f32 0.0, %v1068
  %1070 = vdwg.mxu0
  %v1071 = vadd.f32 %v1042, %v1069
  %vm1072 = vcmask 123904
  %1073 = vst.msk [vmem:[%s8] sm:$0x3] %vm1072, %v1071
  // Predicated region
  $region34: #{image_encoder_forward.1} parent=0 // pred_check
    _
  $region35: #{image_encoder_forward.1} parent=0 // pred_check_branch
    %1075 = sbr.rel (0) target = $region37
  $region36: #{image_encoder_forward.1} parent=0 // pred_region
    _
  $region37: #{image_encoder_forward.1} parent=0 // pred_fallthru
    _
  // Predicated region
  $region38: #{image_encoder_forward.1} parent=0 // pred_check
    _
  $region39: #{image_encoder_forward.1} parent=0 // pred_check_branch
    %1077 = sbr.rel (0) target = $region41
  $region40: #{image_encoder_forward.1} parent=0 // pred_region
    _
  $region41: #{image_encoder_forward.1} parent=0 // pred_fallthru
    _

</llo_original>
